<compile_context>
chip_gen: v6e
topology: v6e:2x2x1
jax: 0.10.0
libtpu: 0.0.40
codegen_flags: <defaults>
</compile_context>

<pallas_src>
import functools
import math

import jax
import jax.numpy as jnp
from jax.experimental import pallas as pl
from jax.experimental.pallas import tpu as pltpu


def _mha_kernel(qkv_ref, wproj_ref, bproj_ref, wfc_ref, bfc_ref, slab_ref,
                *, B, Lq, Lk, d_model, n_head, d_k, d_v):
    H = n_head
    q_off = 0
    k_off = H * d_k
    v_off = 2 * H * d_k

    # One fused block-diagonal projection:
    #   (B*L, 3*d_model) @ (3*d_model, H*(2*d_k+d_v)) + bias  ->  [Q | K | V]
    # (1/temperature already folded into the Q block of wproj/bproj).
    P = (jnp.dot(qkv_ref[...], wproj_ref[...],
                 preferred_element_type=jnp.float32) + bproj_ref[...])

    # Per-(batch, head) score tiles, stacked along the SUBLANE axis so the
    # whole softmax (max / exp / sum / reciprocal) runs once over the stack.
    s_list = []
    for b in range(B):
        r0, r1 = b * Lq, (b + 1) * Lq
        for h in range(H):
            qh = P[r0:r1, q_off + h * d_k: q_off + (h + 1) * d_k]   # (Lq, d_k)
            kh = P[r0:r1, k_off + h * d_k: k_off + (h + 1) * d_k]   # (Lk, d_k)
            # scores_bh = qh @ kh.T without materializing a transpose.
            s_list.append(jax.lax.dot_general(
                qh, kh, (((1,), (1,)), ((), ())),
                preferred_element_type=jnp.float32))                # (Lq, Lk)
    S = jnp.concatenate(s_list, axis=0)                             # (B*H*Lq, Lk)

    m = jnp.max(S, axis=-1, keepdims=True)
    e = jnp.exp(S - m)
    denom = jnp.sum(e, axis=-1, keepdims=True)
    # EUP approximate reciprocal + one Newton step (keeps f32 accuracy,
    # avoids a per-element VPU divide).
    inv = pl.reciprocal(denom, approx=True)
    inv = inv * (2.0 - denom * inv)
    A = e * inv                                                     # (B*H*Lq, Lk)

    # Head-wise output accumulation + direct slice-stores of the attention map
    # (no lane-axis concatenates).
    for b in range(B):
        r0, r1 = b * Lq, (b + 1) * Lq
        acc = jnp.zeros((Lq, d_model), jnp.float32)
        for h in range(H):
            i = b * H + h
            a = A[i * Lq:(i + 1) * Lq, :]                           # (Lq, Lk)
            slab_ref[b, :, d_model + h * Lk: d_model + (h + 1) * Lk] = a
            vh = P[r0:r1, v_off + h * d_v: v_off + (h + 1) * d_v]   # (Lk, d_v)
            r = jnp.dot(a, vh, preferred_element_type=jnp.float32)  # (Lq, d_v)
            acc = acc + jnp.dot(r, wfc_ref[h * d_v:(h + 1) * d_v, :],
                                preferred_element_type=jnp.float32)
        slab_ref[b, :, 0:d_model] = acc + bfc_ref[...]


def multi_head_attention(q, k, v, params, *, n_head, d_k, d_v):
    """Pallas forward of MultiHeadAttention (eval mode). Returns (out, attn)."""
    B, Lq, d_model = q.shape
    Lk = k.shape[1]
    assert k.shape == v.shape and Lq == Lk, "packed-QKV path needs len_q == len_k == len_v"
    H = n_head
    temperature = float(d_k) ** 0.5

    wq, bq = params["w_qs"]    # (H*d_k, d_model), (H*d_k,)
    wk, bk = params["w_ks"]
    wv, bv = params["w_vs"]
    wfc, bfc = params["fc"]    # (d_model, H*d_v), (d_model,)

    # Wrapper-side layout plumbing: one block-diagonal projection weight so the
    # three Q/K/V projections become a single matmul; fold 1/temperature into
    # the Q block; pre-transpose everything so the kernel never transposes.
    proj_out = 2 * H * d_k + H * d_v
    wproj = jnp.zeros((3 * d_model, proj_out), jnp.float32)
    wproj = wproj.at[0:d_model, 0:H * d_k].set((wq / temperature).T)
    wproj = wproj.at[d_model:2 * d_model, H * d_k:2 * H * d_k].set(wk.T)
    wproj = wproj.at[2 * d_model:3 * d_model, 2 * H * d_k:proj_out].set(wv.T)
    bproj = jnp.concatenate([bq / temperature, bk, bv]).reshape(1, proj_out)
    wfc_t = wfc.T                                   # (H*d_v, d_model)
    bfc_r = bfc.reshape(1, d_model)

    # One packed input: (B*L, 3*d_model)  -> one input DMA instead of three.
    qkv = jnp.concatenate([q, k, v], axis=-1).reshape(B * Lq, 3 * d_model)

    slab_w = d_model + H * Lk                        # lane-denser single output

    kernel = functools.partial(_mha_kernel, B=B, Lq=Lq, Lk=Lk, d_model=d_model,
                               n_head=H, d_k=d_k, d_v=d_v)

    def const2(i):
        return (0, 0)

    slab = pl.pallas_call(
        kernel,
        out_shape=jax.ShapeDtypeStruct((B, Lq, slab_w), jnp.float32),
        grid=(1,),                                   # single invocation: no per-batch grid steps
        in_specs=[
            pl.BlockSpec((B * Lq, 3 * d_model), const2),     # packed qkv
            pl.BlockSpec((3 * d_model, proj_out), const2),   # block-diagonal Wproj
            pl.BlockSpec((1, proj_out), const2),             # fused bias row
            pl.BlockSpec((H * d_v, d_model), const2),        # Wfc^T
            pl.BlockSpec((1, d_model), const2),              # bfc
        ],
        out_specs=pl.BlockSpec((B, Lq, slab_w), lambda i: (0, 0, 0)),
        compiler_params=pltpu.CompilerParams(
            dimension_semantics=("arbitrary",)),
    )(qkv, wproj, bproj, wfc_t, bfc_r)

    out = slab[:, :, :d_model]                                       # (B, Lq, d_model)
    attn = slab[:, :, d_model:].reshape(B, Lq, H, Lk).transpose(0, 2, 1, 3)
    return out, attn


def mha_reference(q, k, v, params, *, n_head, d_k, d_v):
    """Pure-JAX reference matching the PyTorch forward (eval mode)."""
    B, Lq, d_model = q.shape
    Lk = k.shape[1]
    wq, bq = params["w_qs"]
    wk, bk = params["w_ks"]
    wv, bv = params["w_vs"]
    wfc, bfc = params["fc"]

    Q = (q @ wq.T + bq).reshape(B, Lq, n_head, d_k).transpose(0, 2, 1, 3)
    K = (k @ wk.T + bk).reshape(B, Lk, n_head, d_k).transpose(0, 2, 1, 3)
    V = (v @ wv.T + bv).reshape(B, Lk, n_head, d_v).transpose(0, 2, 1, 3)

    scores = jnp.einsum("bhqd,bhkd->bhqk", Q / (d_k ** 0.5), K)
    attn = jax.nn.softmax(scores, axis=-1)
    r = jnp.einsum("bhqk,bhkd->bhqd", attn, V)
    r = r.transpose(0, 2, 1, 3).reshape(B, Lq, n_head * d_v)
    out = r @ wfc.T + bfc
    return out, attn


def init_params(key, n_head, d_model, d_k, d_v):
    """Deterministic init mirroring layer_init (orthogonal std=sqrt(2), bias=0)."""
    ortho = jax.nn.initializers.orthogonal(scale=math.sqrt(2.0))
    k1, k2, k3, k4 = jax.random.split(key, 4)
    return {
        "w_qs": (ortho(k1, (n_head * d_k, d_model), jnp.float32),
                 jnp.zeros((n_head * d_k,), jnp.float32)),
        "w_ks": (ortho(k2, (n_head * d_k, d_model), jnp.float32),
                 jnp.zeros((n_head * d_k,), jnp.float32)),
        "w_vs": (ortho(k3, (n_head * d_v, d_model), jnp.float32),
                 jnp.zeros((n_head * d_v,), jnp.float32)),
        "fc":   (ortho(k4, (d_model, n_head * d_v), jnp.float32),
                 jnp.zeros((d_model,), jnp.float32)),
    }


if __name__ == "__main__":
    # Small shapes consistent with the module: B=2, seq=8, d_model=32, 4 heads.
    B, L, d_model = 2, 8, 32
    n_head, d_k, d_v = 4, 8, 8

    key = jax.random.PRNGKey(0)
    kq, kk, kv, kp = jax.random.split(key, 4)
    q = jax.random.normal(kq, (B, L, d_model), jnp.float32)
    k = jax.random.normal(kk, (B, L, d_model), jnp.float32)
    v = jax.random.normal(kv, (B, L, d_model), jnp.float32)
    params = init_params(kp, n_head, d_model, d_k, d_v)

    out, attn = multi_head_attention(q, k, v, params,
                                     n_head=n_head, d_k=d_k, d_v=d_v)
    out = jax.block_until_ready(out)
    attn = jax.block_until_ready(attn)

    out_ref, attn_ref = mha_reference(q, k, v, params,
                                      n_head=n_head, d_k=d_k, d_v=d_v)

    assert out.shape == (B, L, d_model)
    assert attn.shape == (B, n_head, L, L)
    # Slightly looser than bit-exact: temperature folded into Wq, head-wise fc
    # accumulation, and an EUP-seeded (Newton-refined) softmax reciprocal.
    assert jnp.allclose(out, out_ref, atol=1e-3, rtol=1e-3)
    assert jnp.allclose(attn, attn_ref, atol=1e-4, rtol=1e-3)

    print("KERNEL_OK")
</pallas_src>

<mosaic_0001>
module attributes {stable_mosaic.version = 11 : i64} {
  func.func @_mha_kernel(%arg0: i32, %arg1: memref<16x96xf32, #tpu.memory_space<vmem>>, %arg2: memref<96x96xf32, #tpu.memory_space<vmem>>, %arg3: memref<1x96xf32, #tpu.memory_space<vmem>>, %arg4: memref<32x32xf32, #tpu.memory_space<vmem>>, %arg5: memref<1x32xf32, #tpu.memory_space<vmem>>, %arg6: memref<2x8x64xf32, #tpu.memory_space<vmem>>) attributes {dimension_semantics = [#tpu.dimension_semantics<arbitrary>], iteration_bounds = array<i64: 1>, scalar_prefetch = 0 : i64, scratch_operands = 0 : i64, tpu.core_type = #tpu.core_type<tc>, window_params = [{pipeline_mode = #tpu.pipeline_mode<synchronous>, transform_indices = @transform_0, window_bounds = array<i64: 16, 96>}, {pipeline_mode = #tpu.pipeline_mode<synchronous>, transform_indices = @transform_1, window_bounds = array<i64: 96, 96>}, {pipeline_mode = #tpu.pipeline_mode<synchronous>, transform_indices = @transform_2, window_bounds = array<i64: 1, 96>}, {pipeline_mode = #tpu.pipeline_mode<synchronous>, transform_indices = @transform_3, window_bounds = array<i64: 32, 32>}, {pipeline_mode = #tpu.pipeline_mode<synchronous>, transform_indices = @transform_4, window_bounds = array<i64: 1, 32>}, {pipeline_mode = #tpu.pipeline_mode<synchronous>, transform_indices = @transform_5, window_bounds = array<i64: 2, 8, 64>}]} {
    %c0 = arith.constant 0 : index
    %c0_0 = arith.constant 0 : index
    %0 = vector.load %arg1[%c0, %c0_0] : memref<16x96xf32, #tpu.memory_space<vmem>>, vector<16x96xf32>
    %c0_1 = arith.constant 0 : index
    %c0_2 = arith.constant 0 : index
    %1 = vector.load %arg2[%c0_1, %c0_2] : memref<96x96xf32, #tpu.memory_space<vmem>>, vector<96x96xf32>
    %cst = arith.constant dense<0.000000e+00> : vector<16x96xf32>
    %2 = tpu.matmul %0, %1, %cst {dimension_numbers = #tpu.dot_dimension_numbers<[1], [0], [0], [1], [0, 0, 1, 1], [], []>} : vector<16x96xf32>, vector<96x96xf32>, vector<16x96xf32> -> vector<16x96xf32>
    %c0_3 = arith.constant 0 : index
    %c0_4 = arith.constant 0 : index
    %3 = vector.load %arg3[%c0_3, %c0_4] : memref<1x96xf32, #tpu.memory_space<vmem>>, vector<1x96xf32>
    %4 = vector.broadcast %3 : vector<1x96xf32> to vector<16x96xf32>
    %5 = arith.addf %2, %4 : vector<16x96xf32>
    %6 = vector.extract_strided_slice %5 {offsets = [0, 0], sizes = [8, 8], strides = [1, 1]} : vector<16x96xf32> to vector<8x8xf32>
    %7 = vector.extract_strided_slice %5 {offsets = [0, 32], sizes = [8, 8], strides = [1, 1]} : vector<16x96xf32> to vector<8x8xf32>
    %cst_5 = arith.constant dense<0.000000e+00> : vector<8x8xf32>
    %8 = tpu.matmul %6, %7, %cst_5 {dimension_numbers = #tpu.dot_dimension_numbers<[1], [1], [0], [0], [0, 0, 1, 0], [], []>} : vector<8x8xf32>, vector<8x8xf32>, vector<8x8xf32> -> vector<8x8xf32>
    %9 = vector.extract_strided_slice %5 {offsets = [0, 8], sizes = [8, 8], strides = [1, 1]} : vector<16x96xf32> to vector<8x8xf32>
    %10 = vector.extract_strided_slice %5 {offsets = [0, 40], sizes = [8, 8], strides = [1, 1]} : vector<16x96xf32> to vector<8x8xf32>
    %cst_6 = arith.constant dense<0.000000e+00> : vector<8x8xf32>
    %11 = tpu.matmul %9, %10, %cst_6 {dimension_numbers = #tpu.dot_dimension_numbers<[1], [1], [0], [0], [0, 0, 1, 0], [], []>} : vector<8x8xf32>, vector<8x8xf32>, vector<8x8xf32> -> vector<8x8xf32>
    %12 = vector.extract_strided_slice %5 {offsets = [0, 16], sizes = [8, 8], strides = [1, 1]} : vector<16x96xf32> to vector<8x8xf32>
    %13 = vector.extract_strided_slice %5 {offsets = [0, 48], sizes = [8, 8], strides = [1, 1]} : vector<16x96xf32> to vector<8x8xf32>
    %cst_7 = arith.constant dense<0.000000e+00> : vector<8x8xf32>
    %14 = tpu.matmul %12, %13, %cst_7 {dimension_numbers = #tpu.dot_dimension_numbers<[1], [1], [0], [0], [0, 0, 1, 0], [], []>} : vector<8x8xf32>, vector<8x8xf32>, vector<8x8xf32> -> vector<8x8xf32>
    %15 = vector.extract_strided_slice %5 {offsets = [0, 24], sizes = [8, 8], strides = [1, 1]} : vector<16x96xf32> to vector<8x8xf32>
    %16 = vector.extract_strided_slice %5 {offsets = [0, 56], sizes = [8, 8], strides = [1, 1]} : vector<16x96xf32> to vector<8x8xf32>
    %cst_8 = arith.constant dense<0.000000e+00> : vector<8x8xf32>
    %17 = tpu.matmul %15, %16, %cst_8 {dimension_numbers = #tpu.dot_dimension_numbers<[1], [1], [0], [0], [0, 0, 1, 0], [], []>} : vector<8x8xf32>, vector<8x8xf32>, vector<8x8xf32> -> vector<8x8xf32>
    %18 = vector.extract_strided_slice %5 {offsets = [8, 0], sizes = [8, 8], strides = [1, 1]} : vector<16x96xf32> to vector<8x8xf32>
    %19 = vector.extract_strided_slice %5 {offsets = [8, 32], sizes = [8, 8], strides = [1, 1]} : vector<16x96xf32> to vector<8x8xf32>
    %cst_9 = arith.constant dense<0.000000e+00> : vector<8x8xf32>
    %20 = tpu.matmul %18, %19, %cst_9 {dimension_numbers = #tpu.dot_dimension_numbers<[1], [1], [0], [0], [0, 0, 1, 0], [], []>} : vector<8x8xf32>, vector<8x8xf32>, vector<8x8xf32> -> vector<8x8xf32>
    %21 = vector.extract_strided_slice %5 {offsets = [8, 8], sizes = [8, 8], strides = [1, 1]} : vector<16x96xf32> to vector<8x8xf32>
    %22 = vector.extract_strided_slice %5 {offsets = [8, 40], sizes = [8, 8], strides = [1, 1]} : vector<16x96xf32> to vector<8x8xf32>
    %cst_10 = arith.constant dense<0.000000e+00> : vector<8x8xf32>
    %23 = tpu.matmul %21, %22, %cst_10 {dimension_numbers = #tpu.dot_dimension_numbers<[1], [1], [0], [0], [0, 0, 1, 0], [], []>} : vector<8x8xf32>, vector<8x8xf32>, vector<8x8xf32> -> vector<8x8xf32>
    %24 = vector.extract_strided_slice %5 {offsets = [8, 16], sizes = [8, 8], strides = [1, 1]} : vector<16x96xf32> to vector<8x8xf32>
    %25 = vector.extract_strided_slice %5 {offsets = [8, 48], sizes = [8, 8], strides = [1, 1]} : vector<16x96xf32> to vector<8x8xf32>
    %cst_11 = arith.constant dense<0.000000e+00> : vector<8x8xf32>
    %26 = tpu.matmul %24, %25, %cst_11 {dimension_numbers = #tpu.dot_dimension_numbers<[1], [1], [0], [0], [0, 0, 1, 0], [], []>} : vector<8x8xf32>, vector<8x8xf32>, vector<8x8xf32> -> vector<8x8xf32>
    %27 = vector.extract_strided_slice %5 {offsets = [8, 24], sizes = [8, 8], strides = [1, 1]} : vector<16x96xf32> to vector<8x8xf32>
    %28 = vector.extract_strided_slice %5 {offsets = [8, 56], sizes = [8, 8], strides = [1, 1]} : vector<16x96xf32> to vector<8x8xf32>
    %cst_12 = arith.constant dense<0.000000e+00> : vector<8x8xf32>
    %29 = tpu.matmul %27, %28, %cst_12 {dimension_numbers = #tpu.dot_dimension_numbers<[1], [1], [0], [0], [0, 0, 1, 0], [], []>} : vector<8x8xf32>, vector<8x8xf32>, vector<8x8xf32> -> vector<8x8xf32>
    %30 = tpu.concatenate %8, %11, %14, %17, %20, %23, %26, %29 in 0 : vector<8x8xf32>, vector<8x8xf32>, vector<8x8xf32>, vector<8x8xf32>, vector<8x8xf32>, vector<8x8xf32>, vector<8x8xf32>, vector<8x8xf32> -> vector<64x8xf32>
    %cst_13 = arith.constant dense<0xFF800000> : vector<64xf32>
    %31 = vector.multi_reduction <maximumf>, %30, %cst_13 [1] : vector<64x8xf32> to vector<64xf32>
    %32 = vector.shape_cast %31 : vector<64xf32> to vector<64x1xf32>
    %33 = vector.broadcast %32 : vector<64x1xf32> to vector<64x8xf32>
    %34 = arith.subf %30, %33 : vector<64x8xf32>
    %35 = math.exp %34 : vector<64x8xf32>
    %cst_14 = arith.constant dense<0.000000e+00> : vector<64xf32>
    %36 = vector.multi_reduction <add>, %35, %cst_14 [1] : vector<64x8xf32> to vector<64xf32>
    %37 = vector.shape_cast %36 : vector<64xf32> to vector<64x1xf32>
    %38 = tpu.reciprocal %37 {approx = true} : vector<64x1xf32> -> vector<64x1xf32>
    %39 = arith.mulf %37, %38 : vector<64x1xf32>
    %cst_15 = arith.constant 2.000000e+00 : f32
    %40 = vector.broadcast %cst_15 : f32 to vector<64x1xf32>
    %41 = arith.subf %40, %39 : vector<64x1xf32>
    %42 = arith.mulf %38, %41 : vector<64x1xf32>
    %43 = vector.broadcast %42 : vector<64x1xf32> to vector<64x8xf32>
    %44 = arith.mulf %35, %43 : vector<64x8xf32>
    %cst_16 = arith.constant 0.000000e+00 : f32
    %45 = vector.broadcast %cst_16 : f32 to vector<8x32xf32>
    %46 = vector.extract_strided_slice %44 {offsets = [0, 0], sizes = [8, 8], strides = [1, 1]} : vector<64x8xf32> to vector<8x8xf32>
    %c0_17 = arith.constant 0 : index
    %c0_18 = arith.constant 0 : index
    %c32 = arith.constant 32 : index
    %47 = vector.load %arg6[%c0_17, %c0_18, %c32] : memref<2x8x64xf32, #tpu.memory_space<vmem>>, vector<1x8x8xf32>
    %48 = vector.shape_cast %47 : vector<1x8x8xf32> to vector<8x8xf32>
    %49 = vector.shape_cast %46 : vector<8x8xf32> to vector<1x8x8xf32>
    tpu.vector_store %arg6[%c0_17, %c0_18, %c32], %49 {strides = array<i32>} : memref<2x8x64xf32, #tpu.memory_space<vmem>>, vector<1x8x8xf32>,
    %50 = vector.extract_strided_slice %5 {offsets = [0, 64], sizes = [8, 8], strides = [1, 1]} : vector<16x96xf32> to vector<8x8xf32>
    %cst_19 = arith.constant dense<0.000000e+00> : vector<8x8xf32>
    %51 = tpu.matmul %46, %50, %cst_19 {dimension_numbers = #tpu.dot_dimension_numbers<[1], [0], [0], [1], [0, 0, 1, 1], [], []>} : vector<8x8xf32>, vector<8x8xf32>, vector<8x8xf32> -> vector<8x8xf32>
    %c0_20 = arith.constant 0 : index
    %c0_21 = arith.constant 0 : index
    %52 = vector.load %arg4[%c0_20, %c0_21] : memref<32x32xf32, #tpu.memory_space<vmem>>, vector<8x32xf32>
    %cst_22 = arith.constant dense<0.000000e+00> : vector<8x32xf32>
    %53 = tpu.matmul %51, %52, %cst_22 {dimension_numbers = #tpu.dot_dimension_numbers<[1], [0], [0], [1], [0, 0, 1, 1], [], []>} : vector<8x8xf32>, vector<8x32xf32>, vector<8x32xf32> -> vector<8x32xf32>
    %54 = arith.addf %45, %53 : vector<8x32xf32>
    %55 = vector.extract_strided_slice %44 {offsets = [8, 0], sizes = [8, 8], strides = [1, 1]} : vector<64x8xf32> to vector<8x8xf32>
    %c0_23 = arith.constant 0 : index
    %c0_24 = arith.constant 0 : index
    %c40 = arith.constant 40 : index
    %56 = vector.load %arg6[%c0_23, %c0_24, %c40] : memref<2x8x64xf32, #tpu.memory_space<vmem>>, vector<1x8x8xf32>
    %57 = vector.shape_cast %56 : vector<1x8x8xf32> to vector<8x8xf32>
    %58 = vector.shape_cast %55 : vector<8x8xf32> to vector<1x8x8xf32>
    tpu.vector_store %arg6[%c0_23, %c0_24, %c40], %58 {strides = array<i32>} : memref<2x8x64xf32, #tpu.memory_space<vmem>>, vector<1x8x8xf32>,
    %59 = vector.extract_strided_slice %5 {offsets = [0, 72], sizes = [8, 8], strides = [1, 1]} : vector<16x96xf32> to vector<8x8xf32>
    %cst_25 = arith.constant dense<0.000000e+00> : vector<8x8xf32>
    %60 = tpu.matmul %55, %59, %cst_25 {dimension_numbers = #tpu.dot_dimension_numbers<[1], [0], [0], [1], [0, 0, 1, 1], [], []>} : vector<8x8xf32>, vector<8x8xf32>, vector<8x8xf32> -> vector<8x8xf32>
    %c8 = arith.constant 8 : index
    %c0_26 = arith.constant 0 : index
    %61 = vector.load %arg4[%c8, %c0_26] : memref<32x32xf32, #tpu.memory_space<vmem>>, vector<8x32xf32>
    %cst_27 = arith.constant dense<0.000000e+00> : vector<8x32xf32>
    %62 = tpu.matmul %60, %61, %cst_27 {dimension_numbers = #tpu.dot_dimension_numbers<[1], [0], [0], [1], [0, 0, 1, 1], [], []>} : vector<8x8xf32>, vector<8x32xf32>, vector<8x32xf32> -> vector<8x32xf32>
    %63 = arith.addf %54, %62 : vector<8x32xf32>
    %64 = vector.extract_strided_slice %44 {offsets = [16, 0], sizes = [8, 8], strides = [1, 1]} : vector<64x8xf32> to vector<8x8xf32>
    %c0_28 = arith.constant 0 : index
    %c0_29 = arith.constant 0 : index
    %c48 = arith.constant 48 : index
    %65 = vector.load %arg6[%c0_28, %c0_29, %c48] : memref<2x8x64xf32, #tpu.memory_space<vmem>>, vector<1x8x8xf32>
    %66 = vector.shape_cast %65 : vector<1x8x8xf32> to vector<8x8xf32>
    %67 = vector.shape_cast %64 : vector<8x8xf32> to vector<1x8x8xf32>
    tpu.vector_store %arg6[%c0_28, %c0_29, %c48], %67 {strides = array<i32>} : memref<2x8x64xf32, #tpu.memory_space<vmem>>, vector<1x8x8xf32>,
    %68 = vector.extract_strided_slice %5 {offsets = [0, 80], sizes = [8, 8], strides = [1, 1]} : vector<16x96xf32> to vector<8x8xf32>
    %cst_30 = arith.constant dense<0.000000e+00> : vector<8x8xf32>
    %69 = tpu.matmul %64, %68, %cst_30 {dimension_numbers = #tpu.dot_dimension_numbers<[1], [0], [0], [1], [0, 0, 1, 1], [], []>} : vector<8x8xf32>, vector<8x8xf32>, vector<8x8xf32> -> vector<8x8xf32>
    %c16 = arith.constant 16 : index
    %c0_31 = arith.constant 0 : index
    %70 = vector.load %arg4[%c16, %c0_31] : memref<32x32xf32, #tpu.memory_space<vmem>>, vector<8x32xf32>
    %cst_32 = arith.constant dense<0.000000e+00> : vector<8x32xf32>
    %71 = tpu.matmul %69, %70, %cst_32 {dimension_numbers = #tpu.dot_dimension_numbers<[1], [0], [0], [1], [0, 0, 1, 1], [], []>} : vector<8x8xf32>, vector<8x32xf32>, vector<8x32xf32> -> vector<8x32xf32>
    %72 = arith.addf %63, %71 : vector<8x32xf32>
    %73 = vector.extract_strided_slice %44 {offsets = [24, 0], sizes = [8, 8], strides = [1, 1]} : vector<64x8xf32> to vector<8x8xf32>
    %c0_33 = arith.constant 0 : index
    %c0_34 = arith.constant 0 : index
    %c56 = arith.constant 56 : index
    %74 = vector.load %arg6[%c0_33, %c0_34, %c56] : memref<2x8x64xf32, #tpu.memory_space<vmem>>, vector<1x8x8xf32>
    %75 = vector.shape_cast %74 : vector<1x8x8xf32> to vector<8x8xf32>
    %76 = vector.shape_cast %73 : vector<8x8xf32> to vector<1x8x8xf32>
    tpu.vector_store %arg6[%c0_33, %c0_34, %c56], %76 {strides = array<i32>} : memref<2x8x64xf32, #tpu.memory_space<vmem>>, vector<1x8x8xf32>,
    %77 = vector.extract_strided_slice %5 {offsets = [0, 88], sizes = [8, 8], strides = [1, 1]} : vector<16x96xf32> to vector<8x8xf32>
    %cst_35 = arith.constant dense<0.000000e+00> : vector<8x8xf32>
    %78 = tpu.matmul %73, %77, %cst_35 {dimension_numbers = #tpu.dot_dimension_numbers<[1], [0], [0], [1], [0, 0, 1, 1], [], []>} : vector<8x8xf32>, vector<8x8xf32>, vector<8x8xf32> -> vector<8x8xf32>
    %c24 = arith.constant 24 : index
    %c0_36 = arith.constant 0 : index
    %79 = vector.load %arg4[%c24, %c0_36] : memref<32x32xf32, #tpu.memory_space<vmem>>, vector<8x32xf32>
    %cst_37 = arith.constant dense<0.000000e+00> : vector<8x32xf32>
    %80 = tpu.matmul %78, %79, %cst_37 {dimension_numbers = #tpu.dot_dimension_numbers<[1], [0], [0], [1], [0, 0, 1, 1], [], []>} : vector<8x8xf32>, vector<8x32xf32>, vector<8x32xf32> -> vector<8x32xf32>
    %81 = arith.addf %72, %80 : vector<8x32xf32>
    %c0_38 = arith.constant 0 : index
    %c0_39 = arith.constant 0 : index
    %82 = vector.load %arg5[%c0_38, %c0_39] : memref<1x32xf32, #tpu.memory_space<vmem>>, vector<1x32xf32>
    %83 = vector.broadcast %82 : vector<1x32xf32> to vector<8x32xf32>
    %84 = arith.addf %81, %83 : vector<8x32xf32>
    %c0_40 = arith.constant 0 : index
    %c0_41 = arith.constant 0 : index
    %c0_42 = arith.constant 0 : index
    %85 = vector.load %arg6[%c0_40, %c0_41, %c0_42] : memref<2x8x64xf32, #tpu.memory_space<vmem>>, vector<1x8x32xf32>
    %86 = vector.shape_cast %85 : vector<1x8x32xf32> to vector<8x32xf32>
    %87 = vector.shape_cast %84 : vector<8x32xf32> to vector<1x8x32xf32>
    tpu.vector_store %arg6[%c0_40, %c0_41, %c0_42], %87 {strides = array<i32>} : memref<2x8x64xf32, #tpu.memory_space<vmem>>, vector<1x8x32xf32>,
    %cst_43 = arith.constant 0.000000e+00 : f32
    %88 = vector.broadcast %cst_43 : f32 to vector<8x32xf32>
    %89 = vector.extract_strided_slice %44 {offsets = [32, 0], sizes = [8, 8], strides = [1, 1]} : vector<64x8xf32> to vector<8x8xf32>
    %c1 = arith.constant 1 : index
    %c0_44 = arith.constant 0 : index
    %c32_45 = arith.constant 32 : index
    %90 = vector.load %arg6[%c1, %c0_44, %c32_45] : memref<2x8x64xf32, #tpu.memory_space<vmem>>, vector<1x8x8xf32>
    %91 = vector.shape_cast %90 : vector<1x8x8xf32> to vector<8x8xf32>
    %92 = vector.shape_cast %89 : vector<8x8xf32> to vector<1x8x8xf32>
    tpu.vector_store %arg6[%c1, %c0_44, %c32_45], %92 {strides = array<i32>} : memref<2x8x64xf32, #tpu.memory_space<vmem>>, vector<1x8x8xf32>,
    %93 = vector.extract_strided_slice %5 {offsets = [8, 64], sizes = [8, 8], strides = [1, 1]} : vector<16x96xf32> to vector<8x8xf32>
    %cst_46 = arith.constant dense<0.000000e+00> : vector<8x8xf32>
    %94 = tpu.matmul %89, %93, %cst_46 {dimension_numbers = #tpu.dot_dimension_numbers<[1], [0], [0], [1], [0, 0, 1, 1], [], []>} : vector<8x8xf32>, vector<8x8xf32>, vector<8x8xf32> -> vector<8x8xf32>
    %c0_47 = arith.constant 0 : index
    %c0_48 = arith.constant 0 : index
    %95 = vector.load %arg4[%c0_47, %c0_48] : memref<32x32xf32, #tpu.memory_space<vmem>>, vector<8x32xf32>
    %cst_49 = arith.constant dense<0.000000e+00> : vector<8x32xf32>
    %96 = tpu.matmul %94, %95, %cst_49 {dimension_numbers = #tpu.dot_dimension_numbers<[1], [0], [0], [1], [0, 0, 1, 1], [], []>} : vector<8x8xf32>, vector<8x32xf32>, vector<8x32xf32> -> vector<8x32xf32>
    %97 = arith.addf %88, %96 : vector<8x32xf32>
    %98 = vector.extract_strided_slice %44 {offsets = [40, 0], sizes = [8, 8], strides = [1, 1]} : vector<64x8xf32> to vector<8x8xf32>
    %c1_50 = arith.constant 1 : index
    %c0_51 = arith.constant 0 : index
    %c40_52 = arith.constant 40 : index
    %99 = vector.load %arg6[%c1_50, %c0_51, %c40_52] : memref<2x8x64xf32, #tpu.memory_space<vmem>>, vector<1x8x8xf32>
    %100 = vector.shape_cast %99 : vector<1x8x8xf32> to vector<8x8xf32>
    %101 = vector.shape_cast %98 : vector<8x8xf32> to vector<1x8x8xf32>
    tpu.vector_store %arg6[%c1_50, %c0_51, %c40_52], %101 {strides = array<i32>} : memref<2x8x64xf32, #tpu.memory_space<vmem>>, vector<1x8x8xf32>,
    %102 = vector.extract_strided_slice %5 {offsets = [8, 72], sizes = [8, 8], strides = [1, 1]} : vector<16x96xf32> to vector<8x8xf32>
    %cst_53 = arith.constant dense<0.000000e+00> : vector<8x8xf32>
    %103 = tpu.matmul %98, %102, %cst_53 {dimension_numbers = #tpu.dot_dimension_numbers<[1], [0], [0], [1], [0, 0, 1, 1], [], []>} : vector<8x8xf32>, vector<8x8xf32>, vector<8x8xf32> -> vector<8x8xf32>
    %c8_54 = arith.constant 8 : index
    %c0_55 = arith.constant 0 : index
    %104 = vector.load %arg4[%c8_54, %c0_55] : memref<32x32xf32, #tpu.memory_space<vmem>>, vector<8x32xf32>
    %cst_56 = arith.constant dense<0.000000e+00> : vector<8x32xf32>
    %105 = tpu.matmul %103, %104, %cst_56 {dimension_numbers = #tpu.dot_dimension_numbers<[1], [0], [0], [1], [0, 0, 1, 1], [], []>} : vector<8x8xf32>, vector<8x32xf32>, vector<8x32xf32> -> vector<8x32xf32>
    %106 = arith.addf %97, %105 : vector<8x32xf32>
    %107 = vector.extract_strided_slice %44 {offsets = [48, 0], sizes = [8, 8], strides = [1, 1]} : vector<64x8xf32> to vector<8x8xf32>
    %c1_57 = arith.constant 1 : index
    %c0_58 = arith.constant 0 : index
    %c48_59 = arith.constant 48 : index
    %108 = vector.load %arg6[%c1_57, %c0_58, %c48_59] : memref<2x8x64xf32, #tpu.memory_space<vmem>>, vector<1x8x8xf32>
    %109 = vector.shape_cast %108 : vector<1x8x8xf32> to vector<8x8xf32>
    %110 = vector.shape_cast %107 : vector<8x8xf32> to vector<1x8x8xf32>
    tpu.vector_store %arg6[%c1_57, %c0_58, %c48_59], %110 {strides = array<i32>} : memref<2x8x64xf32, #tpu.memory_space<vmem>>, vector<1x8x8xf32>,
    %111 = vector.extract_strided_slice %5 {offsets = [8, 80], sizes = [8, 8], strides = [1, 1]} : vector<16x96xf32> to vector<8x8xf32>
    %cst_60 = arith.constant dense<0.000000e+00> : vector<8x8xf32>
    %112 = tpu.matmul %107, %111, %cst_60 {dimension_numbers = #tpu.dot_dimension_numbers<[1], [0], [0], [1], [0, 0, 1, 1], [], []>} : vector<8x8xf32>, vector<8x8xf32>, vector<8x8xf32> -> vector<8x8xf32>
    %c16_61 = arith.constant 16 : index
    %c0_62 = arith.constant 0 : index
    %113 = vector.load %arg4[%c16_61, %c0_62] : memref<32x32xf32, #tpu.memory_space<vmem>>, vector<8x32xf32>
    %cst_63 = arith.constant dense<0.000000e+00> : vector<8x32xf32>
    %114 = tpu.matmul %112, %113, %cst_63 {dimension_numbers = #tpu.dot_dimension_numbers<[1], [0], [0], [1], [0, 0, 1, 1], [], []>} : vector<8x8xf32>, vector<8x32xf32>, vector<8x32xf32> -> vector<8x32xf32>
    %115 = arith.addf %106, %114 : vector<8x32xf32>
    %116 = vector.extract_strided_slice %44 {offsets = [56, 0], sizes = [8, 8], strides = [1, 1]} : vector<64x8xf32> to vector<8x8xf32>
    %c1_64 = arith.constant 1 : index
    %c0_65 = arith.constant 0 : index
    %c56_66 = arith.constant 56 : index
    %117 = vector.load %arg6[%c1_64, %c0_65, %c56_66] : memref<2x8x64xf32, #tpu.memory_space<vmem>>, vector<1x8x8xf32>
    %118 = vector.shape_cast %117 : vector<1x8x8xf32> to vector<8x8xf32>
    %119 = vector.shape_cast %116 : vector<8x8xf32> to vector<1x8x8xf32>
    tpu.vector_store %arg6[%c1_64, %c0_65, %c56_66], %119 {strides = array<i32>} : memref<2x8x64xf32, #tpu.memory_space<vmem>>, vector<1x8x8xf32>,
    %120 = vector.extract_strided_slice %5 {offsets = [8, 88], sizes = [8, 8], strides = [1, 1]} : vector<16x96xf32> to vector<8x8xf32>
    %cst_67 = arith.constant dense<0.000000e+00> : vector<8x8xf32>
    %121 = tpu.matmul %116, %120, %cst_67 {dimension_numbers = #tpu.dot_dimension_numbers<[1], [0], [0], [1], [0, 0, 1, 1], [], []>} : vector<8x8xf32>, vector<8x8xf32>, vector<8x8xf32> -> vector<8x8xf32>
    %c24_68 = arith.constant 24 : index
    %c0_69 = arith.constant 0 : index
    %122 = vector.load %arg4[%c24_68, %c0_69] : memref<32x32xf32, #tpu.memory_space<vmem>>, vector<8x32xf32>
    %cst_70 = arith.constant dense<0.000000e+00> : vector<8x32xf32>
    %123 = tpu.matmul %121, %122, %cst_70 {dimension_numbers = #tpu.dot_dimension_numbers<[1], [0], [0], [1], [0, 0, 1, 1], [], []>} : vector<8x8xf32>, vector<8x32xf32>, vector<8x32xf32> -> vector<8x32xf32>
    %124 = arith.addf %115, %123 : vector<8x32xf32>
    %c0_71 = arith.constant 0 : index
    %c0_72 = arith.constant 0 : index
    %125 = vector.load %arg5[%c0_71, %c0_72] : memref<1x32xf32, #tpu.memory_space<vmem>>, vector<1x32xf32>
    %126 = vector.broadcast %125 : vector<1x32xf32> to vector<8x32xf32>
    %127 = arith.addf %124, %126 : vector<8x32xf32>
    %c1_73 = arith.constant 1 : index
    %c0_74 = arith.constant 0 : index
    %c0_75 = arith.constant 0 : index
    %128 = vector.load %arg6[%c1_73, %c0_74, %c0_75] : memref<2x8x64xf32, #tpu.memory_space<vmem>>, vector<1x8x32xf32>
    %129 = vector.shape_cast %128 : vector<1x8x32xf32> to vector<8x32xf32>
    %130 = vector.shape_cast %127 : vector<8x32xf32> to vector<1x8x32xf32>
    tpu.vector_store %arg6[%c1_73, %c0_74, %c0_75], %130 {strides = array<i32>} : memref<2x8x64xf32, #tpu.memory_space<vmem>>, vector<1x8x32xf32>,
    return
  }
  func.func @transform_0(%arg0: i32) -> (i32, i32) {
    %c0_i32 = arith.constant 0 : i32
    %c0_i32_0 = arith.constant 0 : i32
    %c0_i32_1 = arith.constant 0 : i32
    return %c0_i32, %c0_i32_0 : i32, i32
  }
  func.func @transform_1(%arg0: i32) -> (i32, i32) {
    %c0_i32 = arith.constant 0 : i32
    %c0_i32_0 = arith.constant 0 : i32
    %c0_i32_1 = arith.constant 0 : i32
    return %c0_i32, %c0_i32_0 : i32, i32
  }
  func.func @transform_2(%arg0: i32) -> (i32, i32) {
    %c0_i32 = arith.constant 0 : i32
    %c0_i32_0 = arith.constant 0 : i32
    %c0_i32_1 = arith.constant 0 : i32
    return %c0_i32, %c0_i32_0 : i32, i32
  }
  func.func @transform_3(%arg0: i32) -> (i32, i32) {
    %c0_i32 = arith.constant 0 : i32
    %c0_i32_0 = arith.constant 0 : i32
    %c0_i32_1 = arith.constant 0 : i32
    return %c0_i32, %c0_i32_0 : i32, i32
  }
  func.func @transform_4(%arg0: i32) -> (i32, i32) {
    %c0_i32 = arith.constant 0 : i32
    %c0_i32_0 = arith.constant 0 : i32
    %c0_i32_1 = arith.constant 0 : i32
    return %c0_i32, %c0_i32_0 : i32, i32
  }
  func.func @transform_5(%arg0: i32) -> (i32, i32, i32) {
    %c0_i32 = arith.constant 0 : i32
    %c0_i32_0 = arith.constant 0 : i32
    %c0_i32_1 = arith.constant 0 : i32
    %c0_i32_2 = arith.constant 0 : i32
    return %c0_i32, %c0_i32_0, %c0_i32_1 : i32, i32, i32
  }
}

</mosaic_0001>

<llo_original>
// kernel: tpu_custom_call.1
$region0: #{tpu_custom_call.1}
  #allocation0 [shape = 'u32[]', space=smem, size = 0x4, offset = 0x4, fixed_abs, tag = 'smem constant byte address 0x4 - core index']
  #allocation1 [shape = 'u32[144,128]{1,0:T(1,128)}', space=vmem, size = 0x12000, scoped, tag = 'internal scratch']
  %s0 = inlined_call_operand.hbm [shape: f32[16,96], index: 0, kind: input, shape index: {}]
  %s1 = inlined_call_operand.hbm [shape: f32[96,96], index: 1, kind: input, shape index: {}]
  %s2 = inlined_call_operand.vmem [shape: f32[1,96], index: 2, kind: input, shape index: {}]
  %s3 = inlined_call_operand.hbm [shape: f32[32,32], index: 3, kind: input, shape index: {}]
  %s4 = inlined_call_operand.vmem [shape: f32[1,32], index: 4, kind: input, shape index: {}]
  %s5 = inlined_call_operand.hbm [shape: f32[2,8,64], index: 5, kind: output, shape index: {}]
  %s6 = sld [smem:[#allocation0]]
  $region42: #{tpu_custom_call.1} parent=0
    _
  %s8 = ssub.s32 1, %s6
  %s9 = scalar_select 0, %s8, %s6
  $region1: #{tpu_custom_call.1} parent=0
    #allocation2 [shape = 'u8[8192]{0}', space=vmem, size = 0x2000, scoped, tag = 'input window, operand 0, single buffered']
    #allocation3 [shape = 's32[1]{0}', space=sflag, size = 0x4, scoped, tag = 'scoped memory for tpu_custom_call.1']
    #allocation4 [shape = 's32[1]{0}', space=sflag, size = 0x4, scoped, tag = 'scoped memory for tpu_custom_call.1']
    #allocation5 [shape = 'u8[49152]{0}', space=vmem, size = 0xc000, scoped, tag = 'input window, operand 1, single buffered']
    #allocation6 [shape = 's32[1]{0}', space=sflag, size = 0x4, scoped, tag = 'scoped memory for tpu_custom_call.1']
    #allocation7 [shape = 'u8[16384]{0}', space=vmem, size = 0x4000, scoped, tag = 'input window, operand 3, single buffered']
    #allocation8 [shape = 'u8[8192]{0}', space=vmem, size = 0x2000, scoped, tag = 'output window, operand 0, single buffered']
    %10 = vsyncpa [#allocation3], 0
    %11 = vsyncpa [#allocation6], 0
    %12 = vsyncpa [#allocation4], 0
    // Predicated region
    $region2: #{tpu_custom_call.1} parent=1 // pred_check
      _
    $region3: #{tpu_custom_call.1} parent=1 // pred_check_branch
      %14 = sbr.rel (0) target = $region5
    $region4: #{tpu_custom_call.1} parent=1 // pred_region
      %s16 = ssub.s32 256, 256
      %17 = vsyncadd [#allocation3], %s16
      %s18 = sshll.u32 [#allocation2], 4
      %s19 = int_to_ptr.vmem [resolvable:$true] %s18
      %24 = dma.hbm_to_vmem [thread:$0]  %s0, 256, %s19, [#allocation3], 128, 128, 8
    $region5: #{tpu_custom_call.1} parent=1 // pred_fallthru
      _
    // Predicated region
    $region6: #{tpu_custom_call.1} parent=1 // pred_check
      _
    $region7: #{tpu_custom_call.1} parent=1 // pred_check_branch
      %26 = sbr.rel (0) target = $region9
    $region8: #{tpu_custom_call.1} parent=1 // pred_region
      %s28 = ssub.s32 1536, 1536
      %29 = vsyncadd [#allocation6], %s28
      %s30 = sshll.u32 [#allocation5], 4
      %s31 = int_to_ptr.vmem [resolvable:$true] %s30
      %36 = dma.hbm_to_vmem [thread:$0]  %s1, 1536, %s31, [#allocation6], 128, 128, 8
    $region9: #{tpu_custom_call.1} parent=1 // pred_fallthru
      _
    // Predicated region
    $region10: #{tpu_custom_call.1} parent=1 // pred_check
      _
    $region11: #{tpu_custom_call.1} parent=1 // pred_check_branch
      %38 = sbr.rel (0) target = $region13
    $region12: #{tpu_custom_call.1} parent=1 // pred_region
      _
    $region13: #{tpu_custom_call.1} parent=1 // pred_fallthru
      _
    // Predicated region
    $region14: #{tpu_custom_call.1} parent=1 // pred_check
      _
    $region15: #{tpu_custom_call.1} parent=1 // pred_check_branch
      %40 = sbr.rel (0) target = $region17
    $region16: #{tpu_custom_call.1} parent=1 // pred_region
      %s42 = ssub.s32 512, 512
      %43 = vsyncadd [#allocation6], %s42
      %s44 = sshll.u32 [#allocation7], 4
      %s45 = int_to_ptr.vmem [resolvable:$true] %s44
      %50 = dma.hbm_to_vmem [thread:$0]  %s3, 512, %s45, [#allocation6], 128, 128, 8
    $region17: #{tpu_custom_call.1} parent=1 // pred_fallthru
      _
    // Predicated region
    $region18: #{tpu_custom_call.1} parent=1 // pred_check
      _
    $region19: #{tpu_custom_call.1} parent=1 // pred_check_branch
      %52 = sbr.rel (0) target = $region21
    $region20: #{tpu_custom_call.1} parent=1 // pred_region
      _
    $region21: #{tpu_custom_call.1} parent=1 // pred_fallthru
      _
    // Predicated region
    $region22: #{tpu_custom_call.1} parent=1 // pred_check
      _
    $region23: #{tpu_custom_call.1} parent=1 // pred_check_branch
      %54 = sbr.rel (0) target = $region25
    $region24: #{tpu_custom_call.1} parent=1 // pred_region
      %55 = dma.done [#allocation3], 256
    $region25: #{tpu_custom_call.1} parent=1 // pred_fallthru
      _
    // Predicated region
    $region26: #{tpu_custom_call.1} parent=1 // pred_check
      _
    $region27: #{tpu_custom_call.1} parent=1 // pred_check_branch
      %57 = sbr.rel (0) target = $region29
    $region28: #{tpu_custom_call.1} parent=1 // pred_region
      %58 = dma.done [#allocation6], 1536
    $region29: #{tpu_custom_call.1} parent=1 // pred_fallthru
      _
    // Predicated region
    $region30: #{tpu_custom_call.1} parent=1 // pred_check
      _
    $region31: #{tpu_custom_call.1} parent=1 // pred_check_branch
      %60 = sbr.rel (0) target = $region33
    $region32: #{tpu_custom_call.1} parent=1 // pred_region
      %61 = dma.done [#allocation6], 512
    $region33: #{tpu_custom_call.1} parent=1 // pred_fallthru
      _
    %v62 = vld [vmem:[#allocation2] sm:$0xff]
    %v63 = vld [vmem:[#allocation2 + $0x8] sm:$0xff]
    %v64 = vld [vmem:[#allocation5] sm:$0xff]
    %v65 = vld [vmem:[#allocation5 + $0x8] sm:$0xff]
    %v66 = vld [vmem:[#allocation5 + $0x10] sm:$0xff]
    %v67 = vld [vmem:[#allocation5 + $0x18] sm:$0xff]
    %v68 = vld [vmem:[#allocation5 + $0x20] sm:$0xff]
    %v69 = vld [vmem:[#allocation5 + $0x28] sm:$0xff]
    %v70 = vld [vmem:[#allocation5 + $0x30] sm:$0xff]
    %v71 = vld [vmem:[#allocation5 + $0x38] sm:$0xff]
    %v72 = vld [vmem:[#allocation5 + $0x40] sm:$0xff]
    %v73 = vld [vmem:[#allocation5 + $0x48] sm:$0xff]
    %v74 = vld [vmem:[#allocation5 + $0x50] sm:$0xff]
    %v75 = vld [vmem:[#allocation5 + $0x58] sm:$0xff]
    %v76 = vld [vmem:[%s2] sm:$0x1]
    %v78 = vlaneseq
    %v79 = vshrl.u32 %v78, 7
    %v80 = vsub.s32 0, %v79
    %v81 = vrot.slane %v76, %v80
    %vm83 = vcmask 785408
    %v85 = vsel %vm83, %v62, 0
    %v88 = vsel %vm83, %v63, 0
    %90 = vmatprep.subr.mxu0 0.0
    %91 = vmatpush1.msra.mxu0 0.0
    %92 = vmatprep.subr.mxu0 0.0
    %93 = vmatpush1.msra.mxu0 0.0
    %94 = vmatprep.subr.mxu0 0.0
    %95 = vmatpush1.msra.mxu0 0.0
    %96 = vmatprep.subr.mxu0 0.0
    %97 = vmatpush1.msra.mxu0 0.0
    %98 = vmatprep.subr.mxu0 0.0
    %99 = vmatpush1.msra.mxu0 %v75
    %100 = vmatprep.subr.mxu0 0.0
    %101 = vmatpush1.msra.mxu0 %v74
    %102 = vmatprep.subr.mxu0 0.0
    %103 = vmatpush1.msra.mxu0 %v73
    %104 = vmatprep.subr.mxu0 0.0
    %105 = vmatpush1.msra.mxu0 %v72
    %106 = vmatprep.subr.mxu0 0.0
    %107 = vmatpush1.msra.mxu0 %v71
    %108 = vmatprep.subr.mxu0 0.0
    %109 = vmatpush1.msra.mxu0 %v70
    %110 = vmatprep.subr.mxu0 0.0
    %111 = vmatpush1.msra.mxu0 %v69
    %112 = vmatprep.subr.mxu0 0.0
    %113 = vmatpush1.msra.mxu0 %v68
    %114 = vmatprep.subr.mxu0 0.0
    %115 = vmatpush1.msra.mxu0 %v67
    %116 = vmatprep.subr.mxu0 0.0
    %117 = vmatpush1.msra.mxu0 %v66
    %118 = vmatprep.subr.mxu0 0.0
    %119 = vmatpush1.msra.mxu0 %v65
    %120 = vmatprep.subr.mxu0 0.0
    %121 = vmatpush1.msra.mxu0 %v64
    %122 = vmatprep.subr.mxu0 0.0
    %123 = vmatpush2.msra.mxu0 0.0
    %124 = vmatprep.subr.mxu0 0.0
    %125 = vmatpush2.msra.mxu0 0.0
    %126 = vmatprep.subr.mxu0 0.0
    %127 = vmatpush2.msra.mxu0 0.0
    %128 = vmatprep.subr.mxu0 0.0
    %129 = vmatpush2.msra.mxu0 0.0
    %130 = vmatprep.subr.mxu0 0.0
    %131 = vmatpush2.msra.mxu0 0.0
    %132 = vmatprep.subr.mxu0 0.0
    %133 = vmatpush2.msra.mxu0 0.0
    %134 = vmatprep.subr.mxu0 0.0
    %135 = vmatpush2.msra.mxu0 0.0
    %136 = vmatprep.subr.mxu0 0.0
    %137 = vmatpush2.msra.mxu0 0.0
    %138 = vmatprep.subr.mxu0 0.0
    %139 = vmatpush2.msra.mxu0 0.0
    %140 = vmatprep.subr.mxu0 0.0
    %141 = vmatpush2.msra.mxu0 0.0
    %142 = vmatprep.subr.mxu0 0.0
    %143 = vmatpush2.msra.mxu0 0.0
    %144 = vmatprep.subr.mxu0 0.0
    %145 = vmatpush2.msra.mxu0 0.0
    %146 = vmatprep.subr.mxu0 0.0
    %147 = vmatpush2.msra.mxu0 0.0
    %148 = vmatprep.subr.mxu0 0.0
    %149 = vmatpush2.msra.mxu0 0.0
    %150 = vmatprep.subr.mxu0 0.0
    %151 = vmatpush2.msra.mxu0 0.0
    %152 = vmatprep.subr.mxu0 0.0
    %153 = vmatpush2.msra.mxu0 0.0
    %154 = vmatprep.mubr.f32.mxu0 0.0
    %155 = vmatmul.mubr.f32.gmra.mxu0 %v85
    %v156 = vpop.f32.mrf.mxu0
    %v157 = vadd.f32 %v81, %v156
    %v158 = vpop.f32.mrf.mxu0
    %159 = vmatprep.mubr.f32.mxu0 0.0
    %160 = vmatmul.mubr.f32.gmra.mxu0 %v88
    %v161 = vpop.f32.mrf.mxu0
    %v162 = vadd.f32 %v81, %v161
    %v163 = vpop.f32.mrf.mxu0
    %164 = vdwg.mxu0
    %166 = vrot.lane.b32.xlu0 %v157, 96
    %v167 = vpop.permute.xlu0 %166
    %vm168 = vcmask 64512
    %v169 = vsel %vm168, %v157, 0
    %v171 = vsel %vm168, %v167, 0
    %173 = vmatprep.subr.mxu0 0.0
    %174 = vmatpush1.xpose.msra.mxu0 0.0
    %175 = vmatprep.subr.mxu0 0.0
    %176 = vmatpush1.xpose.msra.mxu0 0.0
    %177 = vmatprep.subr.mxu0 0.0
    %178 = vmatpush1.xpose.msra.mxu0 0.0
    %179 = vmatprep.subr.mxu0 0.0
    %180 = vmatpush1.xpose.msra.mxu0 0.0
    %181 = vmatprep.subr.mxu0 0.0
    %182 = vmatpush1.xpose.msra.mxu0 0.0
    %183 = vmatprep.subr.mxu0 0.0
    %184 = vmatpush1.xpose.msra.mxu0 0.0
    %185 = vmatprep.subr.mxu0 0.0
    %186 = vmatpush1.xpose.msra.mxu0 0.0
    %187 = vmatprep.subr.mxu0 0.0
    %188 = vmatpush1.xpose.msra.mxu0 0.0
    %189 = vmatprep.subr.mxu0 0.0
    %190 = vmatpush1.xpose.msra.mxu0 0.0
    %191 = vmatprep.subr.mxu0 0.0
    %192 = vmatpush1.xpose.msra.mxu0 0.0
    %193 = vmatprep.subr.mxu0 0.0
    %194 = vmatpush1.xpose.msra.mxu0 0.0
    %195 = vmatprep.subr.mxu0 0.0
    %196 = vmatpush1.xpose.msra.mxu0 0.0
    %197 = vmatprep.subr.mxu0 0.0
    %198 = vmatpush1.xpose.msra.mxu0 0.0
    %199 = vmatprep.subr.mxu0 0.0
    %200 = vmatpush1.xpose.msra.mxu0 0.0
    %201 = vmatprep.subr.mxu0 0.0
    %202 = vmatpush1.xpose.msra.mxu0 0.0
    %203 = vmatprep.subr.mxu0 0.0
    %204 = vmatpush1.xpose.msra.mxu0 %v171
    %205 = vmatprep.subr.mxu0 0.0
    %206 = vmatpush2.xpose.msra.mxu0 0.0
    %207 = vmatprep.subr.mxu0 0.0
    %208 = vmatpush2.xpose.msra.mxu0 0.0
    %209 = vmatprep.subr.mxu0 0.0
    %210 = vmatpush2.xpose.msra.mxu0 0.0
    %211 = vmatprep.subr.mxu0 0.0
    %212 = vmatpush2.xpose.msra.mxu0 0.0
    %213 = vmatprep.subr.mxu0 0.0
    %214 = vmatpush2.xpose.msra.mxu0 0.0
    %215 = vmatprep.subr.mxu0 0.0
    %216 = vmatpush2.xpose.msra.mxu0 0.0
    %217 = vmatprep.subr.mxu0 0.0
    %218 = vmatpush2.xpose.msra.mxu0 0.0
    %219 = vmatprep.subr.mxu0 0.0
    %220 = vmatpush2.xpose.msra.mxu0 0.0
    %221 = vmatprep.subr.mxu0 0.0
    %222 = vmatpush2.xpose.msra.mxu0 0.0
    %223 = vmatprep.subr.mxu0 0.0
    %224 = vmatpush2.xpose.msra.mxu0 0.0
    %225 = vmatprep.subr.mxu0 0.0
    %226 = vmatpush2.xpose.msra.mxu0 0.0
    %227 = vmatprep.subr.mxu0 0.0
    %228 = vmatpush2.xpose.msra.mxu0 0.0
    %229 = vmatprep.subr.mxu0 0.0
    %230 = vmatpush2.xpose.msra.mxu0 0.0
    %231 = vmatprep.subr.mxu0 0.0
    %232 = vmatpush2.xpose.msra.mxu0 0.0
    %233 = vmatprep.subr.mxu0 0.0
    %234 = vmatpush2.xpose.msra.mxu0 0.0
    %235 = vmatprep.subr.mxu0 0.0
    %236 = vmatpush2.xpose.msra.mxu0 0.0
    %237 = vmatprep.mubr.f32.mxu0 0.0
    %238 = vmatmul.mubr.f32.gmra.mxu0 %v169
    %v239 = vpop.f32.mrf.mxu0
    %v240 = vadd.f32 0.0, %v239
    %v241 = vpop.f32.mrf.mxu0
    %242 = vdwg.mxu0
    %243 = vrot.lane.b32.xlu0 %v157, 120
    %v244 = vpop.permute.xlu0 %243
    %245 = vrot.lane.b32.xlu0 %v157, 88
    %v246 = vpop.permute.xlu0 %245
    %v247 = vsel %vm168, %v244, 0
    %v249 = vsel %vm168, %v246, 0
    %251 = vmatprep.subr.mxu0 0.0
    %252 = vmatpush1.xpose.msra.mxu0 0.0
    %253 = vmatprep.subr.mxu0 0.0
    %254 = vmatpush1.xpose.msra.mxu0 0.0
    %255 = vmatprep.subr.mxu0 0.0
    %256 = vmatpush1.xpose.msra.mxu0 0.0
    %257 = vmatprep.subr.mxu0 0.0
    %258 = vmatpush1.xpose.msra.mxu0 0.0
    %259 = vmatprep.subr.mxu0 0.0
    %260 = vmatpush1.xpose.msra.mxu0 0.0
    %261 = vmatprep.subr.mxu0 0.0
    %262 = vmatpush1.xpose.msra.mxu0 0.0
    %263 = vmatprep.subr.mxu0 0.0
    %264 = vmatpush1.xpose.msra.mxu0 0.0
    %265 = vmatprep.subr.mxu0 0.0
    %266 = vmatpush1.xpose.msra.mxu0 0.0
    %267 = vmatprep.subr.mxu0 0.0
    %268 = vmatpush1.xpose.msra.mxu0 0.0
    %269 = vmatprep.subr.mxu0 0.0
    %270 = vmatpush1.xpose.msra.mxu0 0.0
    %271 = vmatprep.subr.mxu0 0.0
    %272 = vmatpush1.xpose.msra.mxu0 0.0
    %273 = vmatprep.subr.mxu0 0.0
    %274 = vmatpush1.xpose.msra.mxu0 0.0
    %275 = vmatprep.subr.mxu0 0.0
    %276 = vmatpush1.xpose.msra.mxu0 0.0
    %277 = vmatprep.subr.mxu0 0.0
    %278 = vmatpush1.xpose.msra.mxu0 0.0
    %279 = vmatprep.subr.mxu0 0.0
    %280 = vmatpush1.xpose.msra.mxu0 0.0
    %281 = vmatprep.subr.mxu0 0.0
    %282 = vmatpush1.xpose.msra.mxu0 %v249
    %283 = vmatprep.subr.mxu0 0.0
    %284 = vmatpush2.xpose.msra.mxu0 0.0
    %285 = vmatprep.subr.mxu0 0.0
    %286 = vmatpush2.xpose.msra.mxu0 0.0
    %287 = vmatprep.subr.mxu0 0.0
    %288 = vmatpush2.xpose.msra.mxu0 0.0
    %289 = vmatprep.subr.mxu0 0.0
    %290 = vmatpush2.xpose.msra.mxu0 0.0
    %291 = vmatprep.subr.mxu0 0.0
    %292 = vmatpush2.xpose.msra.mxu0 0.0
    %293 = vmatprep.subr.mxu0 0.0
    %294 = vmatpush2.xpose.msra.mxu0 0.0
    %295 = vmatprep.subr.mxu0 0.0
    %296 = vmatpush2.xpose.msra.mxu0 0.0
    %297 = vmatprep.subr.mxu0 0.0
    %298 = vmatpush2.xpose.msra.mxu0 0.0
    %299 = vmatprep.subr.mxu0 0.0
    %300 = vmatpush2.xpose.msra.mxu0 0.0
    %301 = vmatprep.subr.mxu0 0.0
    %302 = vmatpush2.xpose.msra.mxu0 0.0
    %303 = vmatprep.subr.mxu0 0.0
    %304 = vmatpush2.xpose.msra.mxu0 0.0
    %305 = vmatprep.subr.mxu0 0.0
    %306 = vmatpush2.xpose.msra.mxu0 0.0
    %307 = vmatprep.subr.mxu0 0.0
    %308 = vmatpush2.xpose.msra.mxu0 0.0
    %309 = vmatprep.subr.mxu0 0.0
    %310 = vmatpush2.xpose.msra.mxu0 0.0
    %311 = vmatprep.subr.mxu0 0.0
    %312 = vmatpush2.xpose.msra.mxu0 0.0
    %313 = vmatprep.subr.mxu0 0.0
    %314 = vmatpush2.xpose.msra.mxu0 0.0
    %315 = vmatprep.mubr.f32.mxu0 0.0
    %316 = vmatmul.mubr.f32.gmra.mxu0 %v247
    %v317 = vpop.f32.mrf.mxu0
    %v318 = vadd.f32 0.0, %v317
    %v319 = vpop.f32.mrf.mxu0
    %320 = vdwg.mxu0
    %321 = vrot.lane.b32.xlu0 %v157, 112
    %v322 = vpop.permute.xlu0 %321
    %323 = vrot.lane.b32.xlu0 %v157, 80
    %v324 = vpop.permute.xlu0 %323
    %v325 = vsel %vm168, %v322, 0
    %v327 = vsel %vm168, %v324, 0
    %329 = vmatprep.subr.mxu0 0.0
    %330 = vmatpush1.xpose.msra.mxu0 0.0
    %331 = vmatprep.subr.mxu0 0.0
    %332 = vmatpush1.xpose.msra.mxu0 0.0
    %333 = vmatprep.subr.mxu0 0.0
    %334 = vmatpush1.xpose.msra.mxu0 0.0
    %335 = vmatprep.subr.mxu0 0.0
    %336 = vmatpush1.xpose.msra.mxu0 0.0
    %337 = vmatprep.subr.mxu0 0.0
    %338 = vmatpush1.xpose.msra.mxu0 0.0
    %339 = vmatprep.subr.mxu0 0.0
    %340 = vmatpush1.xpose.msra.mxu0 0.0
    %341 = vmatprep.subr.mxu0 0.0
    %342 = vmatpush1.xpose.msra.mxu0 0.0
    %343 = vmatprep.subr.mxu0 0.0
    %344 = vmatpush1.xpose.msra.mxu0 0.0
    %345 = vmatprep.subr.mxu0 0.0
    %346 = vmatpush1.xpose.msra.mxu0 0.0
    %347 = vmatprep.subr.mxu0 0.0
    %348 = vmatpush1.xpose.msra.mxu0 0.0
    %349 = vmatprep.subr.mxu0 0.0
    %350 = vmatpush1.xpose.msra.mxu0 0.0
    %351 = vmatprep.subr.mxu0 0.0
    %352 = vmatpush1.xpose.msra.mxu0 0.0
    %353 = vmatprep.subr.mxu0 0.0
    %354 = vmatpush1.xpose.msra.mxu0 0.0
    %355 = vmatprep.subr.mxu0 0.0
    %356 = vmatpush1.xpose.msra.mxu0 0.0
    %357 = vmatprep.subr.mxu0 0.0
    %358 = vmatpush1.xpose.msra.mxu0 0.0
    %359 = vmatprep.subr.mxu0 0.0
    %360 = vmatpush1.xpose.msra.mxu0 %v327
    %361 = vmatprep.subr.mxu0 0.0
    %362 = vmatpush2.xpose.msra.mxu0 0.0
    %363 = vmatprep.subr.mxu0 0.0
    %364 = vmatpush2.xpose.msra.mxu0 0.0
    %365 = vmatprep.subr.mxu0 0.0
    %366 = vmatpush2.xpose.msra.mxu0 0.0
    %367 = vmatprep.subr.mxu0 0.0
    %368 = vmatpush2.xpose.msra.mxu0 0.0
    %369 = vmatprep.subr.mxu0 0.0
    %370 = vmatpush2.xpose.msra.mxu0 0.0
    %371 = vmatprep.subr.mxu0 0.0
    %372 = vmatpush2.xpose.msra.mxu0 0.0
    %373 = vmatprep.subr.mxu0 0.0
    %374 = vmatpush2.xpose.msra.mxu0 0.0
    %375 = vmatprep.subr.mxu0 0.0
    %376 = vmatpush2.xpose.msra.mxu0 0.0
    %377 = vmatprep.subr.mxu0 0.0
    %378 = vmatpush2.xpose.msra.mxu0 0.0
    %379 = vmatprep.subr.mxu0 0.0
    %380 = vmatpush2.xpose.msra.mxu0 0.0
    %381 = vmatprep.subr.mxu0 0.0
    %382 = vmatpush2.xpose.msra.mxu0 0.0
    %383 = vmatprep.subr.mxu0 0.0
    %384 = vmatpush2.xpose.msra.mxu0 0.0
    %385 = vmatprep.subr.mxu0 0.0
    %386 = vmatpush2.xpose.msra.mxu0 0.0
    %387 = vmatprep.subr.mxu0 0.0
    %388 = vmatpush2.xpose.msra.mxu0 0.0
    %389 = vmatprep.subr.mxu0 0.0
    %390 = vmatpush2.xpose.msra.mxu0 0.0
    %391 = vmatprep.subr.mxu0 0.0
    %392 = vmatpush2.xpose.msra.mxu0 0.0
    %393 = vmatprep.mubr.f32.mxu0 0.0
    %394 = vmatmul.mubr.f32.gmra.mxu0 %v325
    %v395 = vpop.f32.mrf.mxu0
    %v396 = vadd.f32 0.0, %v395
    %v397 = vpop.f32.mrf.mxu0
    %398 = vdwg.mxu0
    %399 = vrot.lane.b32.xlu0 %v157, 104
    %v400 = vpop.permute.xlu0 %399
    %401 = vrot.lane.b32.xlu0 %v157, 72
    %v402 = vpop.permute.xlu0 %401
    %v403 = vsel %vm168, %v400, 0
    %v405 = vsel %vm168, %v402, 0
    %407 = vmatprep.subr.mxu0 0.0
    %408 = vmatpush1.xpose.msra.mxu0 0.0
    %409 = vmatprep.subr.mxu0 0.0
    %410 = vmatpush1.xpose.msra.mxu0 0.0
    %411 = vmatprep.subr.mxu0 0.0
    %412 = vmatpush1.xpose.msra.mxu0 0.0
    %413 = vmatprep.subr.mxu0 0.0
    %414 = vmatpush1.xpose.msra.mxu0 0.0
    %415 = vmatprep.subr.mxu0 0.0
    %416 = vmatpush1.xpose.msra.mxu0 0.0
    %417 = vmatprep.subr.mxu0 0.0
    %418 = vmatpush1.xpose.msra.mxu0 0.0
    %419 = vmatprep.subr.mxu0 0.0
    %420 = vmatpush1.xpose.msra.mxu0 0.0
    %421 = vmatprep.subr.mxu0 0.0
    %422 = vmatpush1.xpose.msra.mxu0 0.0
    %423 = vmatprep.subr.mxu0 0.0
    %424 = vmatpush1.xpose.msra.mxu0 0.0
    %425 = vmatprep.subr.mxu0 0.0
    %426 = vmatpush1.xpose.msra.mxu0 0.0
    %427 = vmatprep.subr.mxu0 0.0
    %428 = vmatpush1.xpose.msra.mxu0 0.0
    %429 = vmatprep.subr.mxu0 0.0
    %430 = vmatpush1.xpose.msra.mxu0 0.0
    %431 = vmatprep.subr.mxu0 0.0
    %432 = vmatpush1.xpose.msra.mxu0 0.0
    %433 = vmatprep.subr.mxu0 0.0
    %434 = vmatpush1.xpose.msra.mxu0 0.0
    %435 = vmatprep.subr.mxu0 0.0
    %436 = vmatpush1.xpose.msra.mxu0 0.0
    %437 = vmatprep.subr.mxu0 0.0
    %438 = vmatpush1.xpose.msra.mxu0 %v405
    %439 = vmatprep.subr.mxu0 0.0
    %440 = vmatpush2.xpose.msra.mxu0 0.0
    %441 = vmatprep.subr.mxu0 0.0
    %442 = vmatpush2.xpose.msra.mxu0 0.0
    %443 = vmatprep.subr.mxu0 0.0
    %444 = vmatpush2.xpose.msra.mxu0 0.0
    %445 = vmatprep.subr.mxu0 0.0
    %446 = vmatpush2.xpose.msra.mxu0 0.0
    %447 = vmatprep.subr.mxu0 0.0
    %448 = vmatpush2.xpose.msra.mxu0 0.0
    %449 = vmatprep.subr.mxu0 0.0
    %450 = vmatpush2.xpose.msra.mxu0 0.0
    %451 = vmatprep.subr.mxu0 0.0
    %452 = vmatpush2.xpose.msra.mxu0 0.0
    %453 = vmatprep.subr.mxu0 0.0
    %454 = vmatpush2.xpose.msra.mxu0 0.0
    %455 = vmatprep.subr.mxu0 0.0
    %456 = vmatpush2.xpose.msra.mxu0 0.0
    %457 = vmatprep.subr.mxu0 0.0
    %458 = vmatpush2.xpose.msra.mxu0 0.0
    %459 = vmatprep.subr.mxu0 0.0
    %460 = vmatpush2.xpose.msra.mxu0 0.0
    %461 = vmatprep.subr.mxu0 0.0
    %462 = vmatpush2.xpose.msra.mxu0 0.0
    %463 = vmatprep.subr.mxu0 0.0
    %464 = vmatpush2.xpose.msra.mxu0 0.0
    %465 = vmatprep.subr.mxu0 0.0
    %466 = vmatpush2.xpose.msra.mxu0 0.0
    %467 = vmatprep.subr.mxu0 0.0
    %468 = vmatpush2.xpose.msra.mxu0 0.0
    %469 = vmatprep.subr.mxu0 0.0
    %470 = vmatpush2.xpose.msra.mxu0 0.0
    %471 = vmatprep.mubr.f32.mxu0 0.0
    %472 = vmatmul.mubr.f32.gmra.mxu0 %v403
    %v473 = vpop.f32.mrf.mxu0
    %v474 = vadd.f32 0.0, %v473
    %v475 = vpop.f32.mrf.mxu0
    %476 = vdwg.mxu0
    %478 = vrot.lane.b32.xlu0 %v162, 96
    %v479 = vpop.permute.xlu0 %478
    %v480 = vsel %vm168, %v162, 0
    %v482 = vsel %vm168, %v479, 0
    %484 = vmatprep.subr.mxu0 0.0
    %485 = vmatpush1.xpose.msra.mxu0 0.0
    %486 = vmatprep.subr.mxu0 0.0
    %487 = vmatpush1.xpose.msra.mxu0 0.0
    %488 = vmatprep.subr.mxu0 0.0
    %489 = vmatpush1.xpose.msra.mxu0 0.0
    %490 = vmatprep.subr.mxu0 0.0
    %491 = vmatpush1.xpose.msra.mxu0 0.0
    %492 = vmatprep.subr.mxu0 0.0
    %493 = vmatpush1.xpose.msra.mxu0 0.0
    %494 = vmatprep.subr.mxu0 0.0
    %495 = vmatpush1.xpose.msra.mxu0 0.0
    %496 = vmatprep.subr.mxu0 0.0
    %497 = vmatpush1.xpose.msra.mxu0 0.0
    %498 = vmatprep.subr.mxu0 0.0
    %499 = vmatpush1.xpose.msra.mxu0 0.0
    %500 = vmatprep.subr.mxu0 0.0
    %501 = vmatpush1.xpose.msra.mxu0 0.0
    %502 = vmatprep.subr.mxu0 0.0
    %503 = vmatpush1.xpose.msra.mxu0 0.0
    %504 = vmatprep.subr.mxu0 0.0
    %505 = vmatpush1.xpose.msra.mxu0 0.0
    %506 = vmatprep.subr.mxu0 0.0
    %507 = vmatpush1.xpose.msra.mxu0 0.0
    %508 = vmatprep.subr.mxu0 0.0
    %509 = vmatpush1.xpose.msra.mxu0 0.0
    %510 = vmatprep.subr.mxu0 0.0
    %511 = vmatpush1.xpose.msra.mxu0 0.0
    %512 = vmatprep.subr.mxu0 0.0
    %513 = vmatpush1.xpose.msra.mxu0 0.0
    %514 = vmatprep.subr.mxu0 0.0
    %515 = vmatpush1.xpose.msra.mxu0 %v482
    %516 = vmatprep.subr.mxu0 0.0
    %517 = vmatpush2.xpose.msra.mxu0 0.0
    %518 = vmatprep.subr.mxu0 0.0
    %519 = vmatpush2.xpose.msra.mxu0 0.0
    %520 = vmatprep.subr.mxu0 0.0
    %521 = vmatpush2.xpose.msra.mxu0 0.0
    %522 = vmatprep.subr.mxu0 0.0
    %523 = vmatpush2.xpose.msra.mxu0 0.0
    %524 = vmatprep.subr.mxu0 0.0
    %525 = vmatpush2.xpose.msra.mxu0 0.0
    %526 = vmatprep.subr.mxu0 0.0
    %527 = vmatpush2.xpose.msra.mxu0 0.0
    %528 = vmatprep.subr.mxu0 0.0
    %529 = vmatpush2.xpose.msra.mxu0 0.0
    %530 = vmatprep.subr.mxu0 0.0
    %531 = vmatpush2.xpose.msra.mxu0 0.0
    %532 = vmatprep.subr.mxu0 0.0
    %533 = vmatpush2.xpose.msra.mxu0 0.0
    %534 = vmatprep.subr.mxu0 0.0
    %535 = vmatpush2.xpose.msra.mxu0 0.0
    %536 = vmatprep.subr.mxu0 0.0
    %537 = vmatpush2.xpose.msra.mxu0 0.0
    %538 = vmatprep.subr.mxu0 0.0
    %539 = vmatpush2.xpose.msra.mxu0 0.0
    %540 = vmatprep.subr.mxu0 0.0
    %541 = vmatpush2.xpose.msra.mxu0 0.0
    %542 = vmatprep.subr.mxu0 0.0
    %543 = vmatpush2.xpose.msra.mxu0 0.0
    %544 = vmatprep.subr.mxu0 0.0
    %545 = vmatpush2.xpose.msra.mxu0 0.0
    %546 = vmatprep.subr.mxu0 0.0
    %547 = vmatpush2.xpose.msra.mxu0 0.0
    %548 = vmatprep.mubr.f32.mxu0 0.0
    %549 = vmatmul.mubr.f32.gmra.mxu0 %v480
    %v550 = vpop.f32.mrf.mxu0
    %v551 = vadd.f32 0.0, %v550
    %v552 = vpop.f32.mrf.mxu0
    %553 = vdwg.mxu0
    %554 = vrot.lane.b32.xlu0 %v162, 120
    %v555 = vpop.permute.xlu0 %554
    %556 = vrot.lane.b32.xlu0 %v162, 88
    %v557 = vpop.permute.xlu0 %556
    %v558 = vsel %vm168, %v555, 0
    %v560 = vsel %vm168, %v557, 0
    %562 = vmatprep.subr.mxu0 0.0
    %563 = vmatpush1.xpose.msra.mxu0 0.0
    %564 = vmatprep.subr.mxu0 0.0
    %565 = vmatpush1.xpose.msra.mxu0 0.0
    %566 = vmatprep.subr.mxu0 0.0
    %567 = vmatpush1.xpose.msra.mxu0 0.0
    %568 = vmatprep.subr.mxu0 0.0
    %569 = vmatpush1.xpose.msra.mxu0 0.0
    %570 = vmatprep.subr.mxu0 0.0
    %571 = vmatpush1.xpose.msra.mxu0 0.0
    %572 = vmatprep.subr.mxu0 0.0
    %573 = vmatpush1.xpose.msra.mxu0 0.0
    %574 = vmatprep.subr.mxu0 0.0
    %575 = vmatpush1.xpose.msra.mxu0 0.0
    %576 = vmatprep.subr.mxu0 0.0
    %577 = vmatpush1.xpose.msra.mxu0 0.0
    %578 = vmatprep.subr.mxu0 0.0
    %579 = vmatpush1.xpose.msra.mxu0 0.0
    %580 = vmatprep.subr.mxu0 0.0
    %581 = vmatpush1.xpose.msra.mxu0 0.0
    %582 = vmatprep.subr.mxu0 0.0
    %583 = vmatpush1.xpose.msra.mxu0 0.0
    %584 = vmatprep.subr.mxu0 0.0
    %585 = vmatpush1.xpose.msra.mxu0 0.0
    %586 = vmatprep.subr.mxu0 0.0
    %587 = vmatpush1.xpose.msra.mxu0 0.0
    %588 = vmatprep.subr.mxu0 0.0
    %589 = vmatpush1.xpose.msra.mxu0 0.0
    %590 = vmatprep.subr.mxu0 0.0
    %591 = vmatpush1.xpose.msra.mxu0 0.0
    %592 = vmatprep.subr.mxu0 0.0
    %593 = vmatpush1.xpose.msra.mxu0 %v560
    %594 = vmatprep.subr.mxu0 0.0
    %595 = vmatpush2.xpose.msra.mxu0 0.0
    %596 = vmatprep.subr.mxu0 0.0
    %597 = vmatpush2.xpose.msra.mxu0 0.0
    %598 = vmatprep.subr.mxu0 0.0
    %599 = vmatpush2.xpose.msra.mxu0 0.0
    %600 = vmatprep.subr.mxu0 0.0
    %601 = vmatpush2.xpose.msra.mxu0 0.0
    %602 = vmatprep.subr.mxu0 0.0
    %603 = vmatpush2.xpose.msra.mxu0 0.0
    %604 = vmatprep.subr.mxu0 0.0
    %605 = vmatpush2.xpose.msra.mxu0 0.0
    %606 = vmatprep.subr.mxu0 0.0
    %607 = vmatpush2.xpose.msra.mxu0 0.0
    %608 = vmatprep.subr.mxu0 0.0
    %609 = vmatpush2.xpose.msra.mxu0 0.0
    %610 = vmatprep.subr.mxu0 0.0
    %611 = vmatpush2.xpose.msra.mxu0 0.0
    %612 = vmatprep.subr.mxu0 0.0
    %613 = vmatpush2.xpose.msra.mxu0 0.0
    %614 = vmatprep.subr.mxu0 0.0
    %615 = vmatpush2.xpose.msra.mxu0 0.0
    %616 = vmatprep.subr.mxu0 0.0
    %617 = vmatpush2.xpose.msra.mxu0 0.0
    %618 = vmatprep.subr.mxu0 0.0
    %619 = vmatpush2.xpose.msra.mxu0 0.0
    %620 = vmatprep.subr.mxu0 0.0
    %621 = vmatpush2.xpose.msra.mxu0 0.0
    %622 = vmatprep.subr.mxu0 0.0
    %623 = vmatpush2.xpose.msra.mxu0 0.0
    %624 = vmatprep.subr.mxu0 0.0
    %625 = vmatpush2.xpose.msra.mxu0 0.0
    %626 = vmatprep.mubr.f32.mxu0 0.0
    %627 = vmatmul.mubr.f32.gmra.mxu0 %v558
    %v628 = vpop.f32.mrf.mxu0
    %v629 = vadd.f32 0.0, %v628
    %v630 = vpop.f32.mrf.mxu0
    %631 = vdwg.mxu0
    %632 = vrot.lane.b32.xlu0 %v162, 112
    %v633 = vpop.permute.xlu0 %632
    %634 = vrot.lane.b32.xlu0 %v162, 80
    %v635 = vpop.permute.xlu0 %634
    %v636 = vsel %vm168, %v633, 0
    %v638 = vsel %vm168, %v635, 0
    %640 = vmatprep.subr.mxu0 0.0
    %641 = vmatpush1.xpose.msra.mxu0 0.0
    %642 = vmatprep.subr.mxu0 0.0
    %643 = vmatpush1.xpose.msra.mxu0 0.0
    %644 = vmatprep.subr.mxu0 0.0
    %645 = vmatpush1.xpose.msra.mxu0 0.0
    %646 = vmatprep.subr.mxu0 0.0
    %647 = vmatpush1.xpose.msra.mxu0 0.0
    %648 = vmatprep.subr.mxu0 0.0
    %649 = vmatpush1.xpose.msra.mxu0 0.0
    %650 = vmatprep.subr.mxu0 0.0
    %651 = vmatpush1.xpose.msra.mxu0 0.0
    %652 = vmatprep.subr.mxu0 0.0
    %653 = vmatpush1.xpose.msra.mxu0 0.0
    %654 = vmatprep.subr.mxu0 0.0
    %655 = vmatpush1.xpose.msra.mxu0 0.0
    %656 = vmatprep.subr.mxu0 0.0
    %657 = vmatpush1.xpose.msra.mxu0 0.0
    %658 = vmatprep.subr.mxu0 0.0
    %659 = vmatpush1.xpose.msra.mxu0 0.0
    %660 = vmatprep.subr.mxu0 0.0
    %661 = vmatpush1.xpose.msra.mxu0 0.0
    %662 = vmatprep.subr.mxu0 0.0
    %663 = vmatpush1.xpose.msra.mxu0 0.0
    %664 = vmatprep.subr.mxu0 0.0
    %665 = vmatpush1.xpose.msra.mxu0 0.0
    %666 = vmatprep.subr.mxu0 0.0
    %667 = vmatpush1.xpose.msra.mxu0 0.0
    %668 = vmatprep.subr.mxu0 0.0
    %669 = vmatpush1.xpose.msra.mxu0 0.0
    %670 = vmatprep.subr.mxu0 0.0
    %671 = vmatpush1.xpose.msra.mxu0 %v638
    %672 = vmatprep.subr.mxu0 0.0
    %673 = vmatpush2.xpose.msra.mxu0 0.0
    %674 = vmatprep.subr.mxu0 0.0
    %675 = vmatpush2.xpose.msra.mxu0 0.0
    %676 = vmatprep.subr.mxu0 0.0
    %677 = vmatpush2.xpose.msra.mxu0 0.0
    %678 = vmatprep.subr.mxu0 0.0
    %679 = vmatpush2.xpose.msra.mxu0 0.0
    %680 = vmatprep.subr.mxu0 0.0
    %681 = vmatpush2.xpose.msra.mxu0 0.0
    %682 = vmatprep.subr.mxu0 0.0
    %683 = vmatpush2.xpose.msra.mxu0 0.0
    %684 = vmatprep.subr.mxu0 0.0
    %685 = vmatpush2.xpose.msra.mxu0 0.0
    %686 = vmatprep.subr.mxu0 0.0
    %687 = vmatpush2.xpose.msra.mxu0 0.0
    %688 = vmatprep.subr.mxu0 0.0
    %689 = vmatpush2.xpose.msra.mxu0 0.0
    %690 = vmatprep.subr.mxu0 0.0
    %691 = vmatpush2.xpose.msra.mxu0 0.0
    %692 = vmatprep.subr.mxu0 0.0
    %693 = vmatpush2.xpose.msra.mxu0 0.0
    %694 = vmatprep.subr.mxu0 0.0
    %695 = vmatpush2.xpose.msra.mxu0 0.0
    %696 = vmatprep.subr.mxu0 0.0
    %697 = vmatpush2.xpose.msra.mxu0 0.0
    %698 = vmatprep.subr.mxu0 0.0
    %699 = vmatpush2.xpose.msra.mxu0 0.0
    %700 = vmatprep.subr.mxu0 0.0
    %701 = vmatpush2.xpose.msra.mxu0 0.0
    %702 = vmatprep.subr.mxu0 0.0
    %703 = vmatpush2.xpose.msra.mxu0 0.0
    %704 = vmatprep.mubr.f32.mxu0 0.0
    %705 = vmatmul.mubr.f32.gmra.mxu0 %v636
    %v706 = vpop.f32.mrf.mxu0
    %v707 = vadd.f32 0.0, %v706
    %v708 = vpop.f32.mrf.mxu0
    %709 = vdwg.mxu0
    %710 = vrot.lane.b32.xlu0 %v162, 104
    %v711 = vpop.permute.xlu0 %710
    %712 = vrot.lane.b32.xlu0 %v162, 72
    %v713 = vpop.permute.xlu0 %712
    %v714 = vsel %vm168, %v711, 0
    %v716 = vsel %vm168, %v713, 0
    %718 = vmatprep.subr.mxu0 0.0
    %719 = vmatpush1.xpose.msra.mxu0 0.0
    %720 = vmatprep.subr.mxu0 0.0
    %721 = vmatpush1.xpose.msra.mxu0 0.0
    %722 = vmatprep.subr.mxu0 0.0
    %723 = vmatpush1.xpose.msra.mxu0 0.0
    %724 = vmatprep.subr.mxu0 0.0
    %725 = vmatpush1.xpose.msra.mxu0 0.0
    %726 = vmatprep.subr.mxu0 0.0
    %727 = vmatpush1.xpose.msra.mxu0 0.0
    %728 = vmatprep.subr.mxu0 0.0
    %729 = vmatpush1.xpose.msra.mxu0 0.0
    %730 = vmatprep.subr.mxu0 0.0
    %731 = vmatpush1.xpose.msra.mxu0 0.0
    %732 = vmatprep.subr.mxu0 0.0
    %733 = vmatpush1.xpose.msra.mxu0 0.0
    %734 = vmatprep.subr.mxu0 0.0
    %735 = vmatpush1.xpose.msra.mxu0 0.0
    %736 = vmatprep.subr.mxu0 0.0
    %737 = vmatpush1.xpose.msra.mxu0 0.0
    %738 = vmatprep.subr.mxu0 0.0
    %739 = vmatpush1.xpose.msra.mxu0 0.0
    %740 = vmatprep.subr.mxu0 0.0
    %741 = vmatpush1.xpose.msra.mxu0 0.0
    %742 = vmatprep.subr.mxu0 0.0
    %743 = vmatpush1.xpose.msra.mxu0 0.0
    %744 = vmatprep.subr.mxu0 0.0
    %745 = vmatpush1.xpose.msra.mxu0 0.0
    %746 = vmatprep.subr.mxu0 0.0
    %747 = vmatpush1.xpose.msra.mxu0 0.0
    %748 = vmatprep.subr.mxu0 0.0
    %749 = vmatpush1.xpose.msra.mxu0 %v716
    %750 = vmatprep.subr.mxu0 0.0
    %751 = vmatpush2.xpose.msra.mxu0 0.0
    %752 = vmatprep.subr.mxu0 0.0
    %753 = vmatpush2.xpose.msra.mxu0 0.0
    %754 = vmatprep.subr.mxu0 0.0
    %755 = vmatpush2.xpose.msra.mxu0 0.0
    %756 = vmatprep.subr.mxu0 0.0
    %757 = vmatpush2.xpose.msra.mxu0 0.0
    %758 = vmatprep.subr.mxu0 0.0
    %759 = vmatpush2.xpose.msra.mxu0 0.0
    %760 = vmatprep.subr.mxu0 0.0
    %761 = vmatpush2.xpose.msra.mxu0 0.0
    %762 = vmatprep.subr.mxu0 0.0
    %763 = vmatpush2.xpose.msra.mxu0 0.0
    %764 = vmatprep.subr.mxu0 0.0
    %765 = vmatpush2.xpose.msra.mxu0 0.0
    %766 = vmatprep.subr.mxu0 0.0
    %767 = vmatpush2.xpose.msra.mxu0 0.0
    %768 = vmatprep.subr.mxu0 0.0
    %769 = vmatpush2.xpose.msra.mxu0 0.0
    %770 = vmatprep.subr.mxu0 0.0
    %771 = vmatpush2.xpose.msra.mxu0 0.0
    %772 = vmatprep.subr.mxu0 0.0
    %773 = vmatpush2.xpose.msra.mxu0 0.0
    %774 = vmatprep.subr.mxu0 0.0
    %775 = vmatpush2.xpose.msra.mxu0 0.0
    %776 = vmatprep.subr.mxu0 0.0
    %777 = vmatpush2.xpose.msra.mxu0 0.0
    %778 = vmatprep.subr.mxu0 0.0
    %779 = vmatpush2.xpose.msra.mxu0 0.0
    %780 = vmatprep.subr.mxu0 0.0
    %781 = vmatpush2.xpose.msra.mxu0 0.0
    %782 = vmatprep.mubr.f32.mxu0 0.0
    %783 = vmatmul.mubr.f32.gmra.mxu0 %v714
    %v784 = vpop.f32.mrf.mxu0
    %v785 = vadd.f32 0.0, %v784
    %v786 = vpop.f32.mrf.mxu0
    %787 = vdwg.mxu0
    %v788 = vsel %vm168, %v240, -inf
    %789 = vmax.xlane.f32.xlu0 %v788
    %v790 = vpop.xlane.xlu0 %789
    %v791 = vsel %vm168, %v318, -inf
    %792 = vmax.xlane.f32.xlu0 %v791
    %v793 = vpop.xlane.xlu0 %792
    %v794 = vsel %vm168, %v396, -inf
    %795 = vmax.xlane.f32.xlu0 %v794
    %v796 = vpop.xlane.xlu0 %795
    %v797 = vsel %vm168, %v474, -inf
    %798 = vmax.xlane.f32.xlu0 %v797
    %v799 = vpop.xlane.xlu0 %798
    %v800 = vsel %vm168, %v551, -inf
    %801 = vmax.xlane.f32.xlu0 %v800
    %v802 = vpop.xlane.xlu0 %801
    %v803 = vsel %vm168, %v629, -inf
    %804 = vmax.xlane.f32.xlu0 %v803
    %v805 = vpop.xlane.xlu0 %804
    %v806 = vsel %vm168, %v707, -inf
    %807 = vmax.xlane.f32.xlu0 %v806
    %v808 = vpop.xlane.xlu0 %807
    %v809 = vsel %vm168, %v785, -inf
    %810 = vmax.xlane.f32.xlu0 %v809
    %v811 = vpop.xlane.xlu0 %810
    %v812 = vsub.f32 %v240, %v790
    %v813 = vsub.f32 %v318, %v793
    %v814 = vsub.f32 %v396, %v796
    %v815 = vsub.f32 %v474, %v799
    %v816 = vsub.f32 %v551, %v802
    %v817 = vsub.f32 %v629, %v805
    %v818 = vsub.f32 %v707, %v808
    %v819 = vsub.f32 %v785, %v811
    %v820 = vmul.f32 %v812, 1.442695
    %v821 = vpow.pop %v820
    %v822 = vmul.f32 %v813, 1.442695
    %v823 = vpow.pop %v822
    %v824 = vmul.f32 %v814, 1.442695
    %v825 = vpow.pop %v824
    %v826 = vmul.f32 %v815, 1.442695
    %v827 = vpow.pop %v826
    %v828 = vmul.f32 %v816, 1.442695
    %v829 = vpow.pop %v828
    %v830 = vmul.f32 %v817, 1.442695
    %v831 = vpow.pop %v830
    %v832 = vmul.f32 %v818, 1.442695
    %v833 = vpow.pop %v832
    %v834 = vmul.f32 %v819, 1.442695
    %v835 = vpow.pop %v834
    %v836 = vsel %vm168, %v821, 0.0
    %837 = vadd.xlane.f32.xlu0 %v836
    %v838 = vpop.xlane.xlu0 %837
    %v839 = vsel %vm168, %v823, 0.0
    %840 = vadd.xlane.f32.xlu0 %v839
    %v841 = vpop.xlane.xlu0 %840
    %v842 = vsel %vm168, %v825, 0.0
    %843 = vadd.xlane.f32.xlu0 %v842
    %v844 = vpop.xlane.xlu0 %843
    %v845 = vsel %vm168, %v827, 0.0
    %846 = vadd.xlane.f32.xlu0 %v845
    %v847 = vpop.xlane.xlu0 %846
    %v848 = vsel %vm168, %v829, 0.0
    %849 = vadd.xlane.f32.xlu0 %v848
    %v850 = vpop.xlane.xlu0 %849
    %v851 = vsel %vm168, %v831, 0.0
    %852 = vadd.xlane.f32.xlu0 %v851
    %v853 = vpop.xlane.xlu0 %852
    %v854 = vsel %vm168, %v833, 0.0
    %855 = vadd.xlane.f32.xlu0 %v854
    %v856 = vpop.xlane.xlu0 %855
    %v857 = vsel %vm168, %v835, 0.0
    %858 = vadd.xlane.f32.xlu0 %v857
    %v859 = vpop.xlane.xlu0 %858
    %v860 = vrcp.pop %v838
    %v861 = vrcp.pop %v841
    %v862 = vrcp.pop %v844
    %v863 = vrcp.pop %v847
    %v864 = vrcp.pop %v850
    %v865 = vrcp.pop %v853
    %v866 = vrcp.pop %v856
    %v867 = vrcp.pop %v859
    %v868 = vmul.f32 %v838, %v860
    %v869 = vmul.f32 %v841, %v861
    %v870 = vmul.f32 %v844, %v862
    %v871 = vmul.f32 %v847, %v863
    %v872 = vmul.f32 %v850, %v864
    %v873 = vmul.f32 %v853, %v865
    %v874 = vmul.f32 %v856, %v866
    %v875 = vmul.f32 %v859, %v867
    %v876 = vsub.f32 2.0, %v868
    %v877 = vsub.f32 2.0, %v869
    %v878 = vsub.f32 2.0, %v870
    %v879 = vsub.f32 2.0, %v871
    %v880 = vsub.f32 2.0, %v872
    %v881 = vsub.f32 2.0, %v873
    %v882 = vsub.f32 2.0, %v874
    %v883 = vsub.f32 2.0, %v875
    %v884 = vmul.f32 %v860, %v876
    %v885 = vmul.f32 %v861, %v877
    %v886 = vmul.f32 %v862, %v878
    %v887 = vmul.f32 %v863, %v879
    %v888 = vmul.f32 %v864, %v880
    %v889 = vmul.f32 %v865, %v881
    %v890 = vmul.f32 %v866, %v882
    %v891 = vmul.f32 %v867, %v883
    %v892 = vmul.f32 %v821, %v884
    %v893 = vmul.f32 %v823, %v885
    %v894 = vmul.f32 %v825, %v886
    %v895 = vmul.f32 %v827, %v887
    %v896 = vmul.f32 %v829, %v888
    %v897 = vmul.f32 %v831, %v889
    %v898 = vmul.f32 %v833, %v890
    %v899 = vmul.f32 %v835, %v891
    %901 = vrot.lane.b32.xlu0 %v892, 32
    %v902 = vpop.permute.xlu0 %901
    %vm904 = vcmask 326912
    %905 = vst.msk [vmem:[#allocation8] sm:$0xff] %vm904, %v902
    %906 = vrot.lane.b32.xlu0 %v157, 64
    %v907 = vpop.permute.xlu0 %906
    %v909 = vsel %vm168, %v892, 0
    %911 = vmatprep.subr.mxu0 0.0
    %912 = vmatpush1.msra.mxu0 0.0
    %913 = vmatprep.subr.mxu0 0.0
    %914 = vmatpush1.msra.mxu0 0.0
    %915 = vmatprep.subr.mxu0 0.0
    %916 = vmatpush1.msra.mxu0 0.0
    %917 = vmatprep.subr.mxu0 0.0
    %918 = vmatpush1.msra.mxu0 0.0
    %919 = vmatprep.subr.mxu0 0.0
    %920 = vmatpush1.msra.mxu0 0.0
    %921 = vmatprep.subr.mxu0 0.0
    %922 = vmatpush1.msra.mxu0 0.0
    %923 = vmatprep.subr.mxu0 0.0
    %924 = vmatpush1.msra.mxu0 0.0
    %925 = vmatprep.subr.mxu0 0.0
    %926 = vmatpush1.msra.mxu0 0.0
    %927 = vmatprep.subr.mxu0 0.0
    %928 = vmatpush1.msra.mxu0 0.0
    %929 = vmatprep.subr.mxu0 0.0
    %930 = vmatpush1.msra.mxu0 0.0
    %931 = vmatprep.subr.mxu0 0.0
    %932 = vmatpush1.msra.mxu0 0.0
    %933 = vmatprep.subr.mxu0 0.0
    %934 = vmatpush1.msra.mxu0 0.0
    %935 = vmatprep.subr.mxu0 0.0
    %936 = vmatpush1.msra.mxu0 0.0
    %937 = vmatprep.subr.mxu0 0.0
    %938 = vmatpush1.msra.mxu0 0.0
    %939 = vmatprep.subr.mxu0 0.0
    %940 = vmatpush1.msra.mxu0 0.0
    %941 = vmatprep.subr.mxu0 0.0
    %942 = vmatpush1.msra.mxu0 %v907
    %943 = vmatprep.subr.mxu0 0.0
    %944 = vmatpush2.msra.mxu0 0.0
    %945 = vmatprep.subr.mxu0 0.0
    %946 = vmatpush2.msra.mxu0 0.0
    %947 = vmatprep.subr.mxu0 0.0
    %948 = vmatpush2.msra.mxu0 0.0
    %949 = vmatprep.subr.mxu0 0.0
    %950 = vmatpush2.msra.mxu0 0.0
    %951 = vmatprep.subr.mxu0 0.0
    %952 = vmatpush2.msra.mxu0 0.0
    %953 = vmatprep.subr.mxu0 0.0
    %954 = vmatpush2.msra.mxu0 0.0
    %955 = vmatprep.subr.mxu0 0.0
    %956 = vmatpush2.msra.mxu0 0.0
    %957 = vmatprep.subr.mxu0 0.0
    %958 = vmatpush2.msra.mxu0 0.0
    %959 = vmatprep.subr.mxu0 0.0
    %960 = vmatpush2.msra.mxu0 0.0
    %961 = vmatprep.subr.mxu0 0.0
    %962 = vmatpush2.msra.mxu0 0.0
    %963 = vmatprep.subr.mxu0 0.0
    %964 = vmatpush2.msra.mxu0 0.0
    %965 = vmatprep.subr.mxu0 0.0
    %966 = vmatpush2.msra.mxu0 0.0
    %967 = vmatprep.subr.mxu0 0.0
    %968 = vmatpush2.msra.mxu0 0.0
    %969 = vmatprep.subr.mxu0 0.0
    %970 = vmatpush2.msra.mxu0 0.0
    %971 = vmatprep.subr.mxu0 0.0
    %972 = vmatpush2.msra.mxu0 0.0
    %973 = vmatprep.subr.mxu0 0.0
    %974 = vmatpush2.msra.mxu0 0.0
    %975 = vmatprep.mubr.f32.mxu0 0.0
    %976 = vmatmul.mubr.f32.gmra.mxu0 %v909
    %v977 = vpop.f32.mrf.mxu0
    %v978 = vadd.f32 0.0, %v977
    %v979 = vpop.f32.mrf.mxu0
    %980 = vdwg.mxu0
    %v981 = vld [vmem:[#allocation7] sm:$0xff]
    %983 = vrot.lane.b32.xlu0 %v893, 40
    %v984 = vpop.permute.xlu0 %983
    %vm986 = vcmask 392512
    %987 = vst.msk [vmem:[#allocation8] sm:$0xff] %vm986, %v984
    %988 = vrot.lane.b32.xlu0 %v157, 56
    %v989 = vpop.permute.xlu0 %988
    %v991 = vsel %vm168, %v893, 0
    %993 = vmatprep.subr.mxu0 0.0
    %994 = vmatpush1.msra.mxu0 0.0
    %995 = vmatprep.subr.mxu0 0.0
    %996 = vmatpush1.msra.mxu0 0.0
    %997 = vmatprep.subr.mxu0 0.0
    %998 = vmatpush1.msra.mxu0 0.0
    %999 = vmatprep.subr.mxu0 0.0
    %1000 = vmatpush1.msra.mxu0 0.0
    %1001 = vmatprep.subr.mxu0 0.0
    %1002 = vmatpush1.msra.mxu0 0.0
    %1003 = vmatprep.subr.mxu0 0.0
    %1004 = vmatpush1.msra.mxu0 0.0
    %1005 = vmatprep.subr.mxu0 0.0
    %1006 = vmatpush1.msra.mxu0 0.0
    %1007 = vmatprep.subr.mxu0 0.0
    %1008 = vmatpush1.msra.mxu0 0.0
    %1009 = vmatprep.subr.mxu0 0.0
    %1010 = vmatpush1.msra.mxu0 0.0
    %1011 = vmatprep.subr.mxu0 0.0
    %1012 = vmatpush1.msra.mxu0 0.0
    %1013 = vmatprep.subr.mxu0 0.0
    %1014 = vmatpush1.msra.mxu0 0.0
    %1015 = vmatprep.subr.mxu0 0.0
    %1016 = vmatpush1.msra.mxu0 0.0
    %1017 = vmatprep.subr.mxu0 0.0
    %1018 = vmatpush1.msra.mxu0 0.0
    %1019 = vmatprep.subr.mxu0 0.0
    %1020 = vmatpush1.msra.mxu0 0.0
    %1021 = vmatprep.subr.mxu0 0.0
    %1022 = vmatpush1.msra.mxu0 0.0
    %1023 = vmatprep.subr.mxu0 0.0
    %1024 = vmatpush1.msra.mxu0 %v989
    %1025 = vmatprep.subr.mxu0 0.0
    %1026 = vmatpush2.msra.mxu0 0.0
    %1027 = vmatprep.subr.mxu0 0.0
    %1028 = vmatpush2.msra.mxu0 0.0
    %1029 = vmatprep.subr.mxu0 0.0
    %1030 = vmatpush2.msra.mxu0 0.0
    %1031 = vmatprep.subr.mxu0 0.0
    %1032 = vmatpush2.msra.mxu0 0.0
    %1033 = vmatprep.subr.mxu0 0.0
    %1034 = vmatpush2.msra.mxu0 0.0
    %1035 = vmatprep.subr.mxu0 0.0
    %1036 = vmatpush2.msra.mxu0 0.0
    %1037 = vmatprep.subr.mxu0 0.0
    %1038 = vmatpush2.msra.mxu0 0.0
    %1039 = vmatprep.subr.mxu0 0.0
    %1040 = vmatpush2.msra.mxu0 0.0
    %1041 = vmatprep.subr.mxu0 0.0
    %1042 = vmatpush2.msra.mxu0 0.0
    %1043 = vmatprep.subr.mxu0 0.0
    %1044 = vmatpush2.msra.mxu0 0.0
    %1045 = vmatprep.subr.mxu0 0.0
    %1046 = vmatpush2.msra.mxu0 0.0
    %1047 = vmatprep.subr.mxu0 0.0
    %1048 = vmatpush2.msra.mxu0 0.0
    %1049 = vmatprep.subr.mxu0 0.0
    %1050 = vmatpush2.msra.mxu0 0.0
    %1051 = vmatprep.subr.mxu0 0.0
    %1052 = vmatpush2.msra.mxu0 0.0
    %1053 = vmatprep.subr.mxu0 0.0
    %1054 = vmatpush2.msra.mxu0 0.0
    %1055 = vmatprep.subr.mxu0 0.0
    %1056 = vmatpush2.msra.mxu0 0.0
    %1057 = vmatprep.mubr.f32.mxu0 0.0
    %1058 = vmatmul.mubr.f32.gmra.mxu0 %v991
    %v1059 = vpop.f32.mrf.mxu0
    %v1060 = vadd.f32 0.0, %v1059
    %v1061 = vpop.f32.mrf.mxu0
    %1062 = vdwg.mxu0
    %v1063 = vld [vmem:[#allocation7 + $0x8] sm:$0xff]
    %v1065 = vsel %vm168, %v1060, 0
    %1067 = vmatprep.subr.mxu0 0.0
    %1068 = vmatpush1.msra.mxu0 0.0
    %1069 = vmatprep.subr.mxu0 0.0
    %1070 = vmatpush1.msra.mxu0 0.0
    %1071 = vmatprep.subr.mxu0 0.0
    %1072 = vmatpush1.msra.mxu0 0.0
    %1073 = vmatprep.subr.mxu0 0.0
    %1074 = vmatpush1.msra.mxu0 0.0
    %1075 = vmatprep.subr.mxu0 0.0
    %1076 = vmatpush1.msra.mxu0 0.0
    %1077 = vmatprep.subr.mxu0 0.0
    %1078 = vmatpush1.msra.mxu0 0.0
    %1079 = vmatprep.subr.mxu0 0.0
    %1080 = vmatpush1.msra.mxu0 0.0
    %1081 = vmatprep.subr.mxu0 0.0
    %1082 = vmatpush1.msra.mxu0 0.0
    %1083 = vmatprep.subr.mxu0 0.0
    %1084 = vmatpush1.msra.mxu0 0.0
    %1085 = vmatprep.subr.mxu0 0.0
    %1086 = vmatpush1.msra.mxu0 0.0
    %1087 = vmatprep.subr.mxu0 0.0
    %1088 = vmatpush1.msra.mxu0 0.0
    %1089 = vmatprep.subr.mxu0 0.0
    %1090 = vmatpush1.msra.mxu0 0.0
    %1091 = vmatprep.subr.mxu0 0.0
    %1092 = vmatpush1.msra.mxu0 0.0
    %1093 = vmatprep.subr.mxu0 0.0
    %1094 = vmatpush1.msra.mxu0 0.0
    %1095 = vmatprep.subr.mxu0 0.0
    %1096 = vmatpush1.msra.mxu0 0.0
    %1097 = vmatprep.subr.mxu0 0.0
    %1098 = vmatpush1.msra.mxu0 %v1063
    %1099 = vmatprep.subr.mxu0 0.0
    %1100 = vmatpush2.msra.mxu0 0.0
    %1101 = vmatprep.subr.mxu0 0.0
    %1102 = vmatpush2.msra.mxu0 0.0
    %1103 = vmatprep.subr.mxu0 0.0
    %1104 = vmatpush2.msra.mxu0 0.0
    %1105 = vmatprep.subr.mxu0 0.0
    %1106 = vmatpush2.msra.mxu0 0.0
    %1107 = vmatprep.subr.mxu0 0.0
    %1108 = vmatpush2.msra.mxu0 0.0
    %1109 = vmatprep.subr.mxu0 0.0
    %1110 = vmatpush2.msra.mxu0 0.0
    %1111 = vmatprep.subr.mxu0 0.0
    %1112 = vmatpush2.msra.mxu0 0.0
    %1113 = vmatprep.subr.mxu0 0.0
    %1114 = vmatpush2.msra.mxu0 0.0
    %1115 = vmatprep.subr.mxu0 0.0
    %1116 = vmatpush2.msra.mxu0 0.0
    %1117 = vmatprep.subr.mxu0 0.0
    %1118 = vmatpush2.msra.mxu0 0.0
    %1119 = vmatprep.subr.mxu0 0.0
    %1120 = vmatpush2.msra.mxu0 0.0
    %1121 = vmatprep.subr.mxu0 0.0
    %1122 = vmatpush2.msra.mxu0 0.0
    %1123 = vmatprep.subr.mxu0 0.0
    %1124 = vmatpush2.msra.mxu0 0.0
    %1125 = vmatprep.subr.mxu0 0.0
    %1126 = vmatpush2.msra.mxu0 0.0
    %1127 = vmatprep.subr.mxu0 0.0
    %1128 = vmatpush2.msra.mxu0 0.0
    %1129 = vmatprep.subr.mxu0 0.0
    %1130 = vmatpush2.msra.mxu0 0.0
    %1131 = vmatprep.mubr.f32.mxu0 0.0
    %1132 = vmatmul.mubr.f32.gmra.mxu0 %v1065
    %v1133 = vpop.f32.mrf.mxu0
    %v1134 = vadd.f32 0.0, %v1133
    %v1135 = vpop.f32.mrf.mxu0
    %1136 = vdwg.mxu0
    %v1138 = vsel %vm168, %v978, 0
    %1140 = vmatprep.subr.mxu0 0.0
    %1141 = vmatpush1.msra.mxu0 0.0
    %1142 = vmatprep.subr.mxu0 0.0
    %1143 = vmatpush1.msra.mxu0 0.0
    %1144 = vmatprep.subr.mxu0 0.0
    %1145 = vmatpush1.msra.mxu0 0.0
    %1146 = vmatprep.subr.mxu0 0.0
    %1147 = vmatpush1.msra.mxu0 0.0
    %1148 = vmatprep.subr.mxu0 0.0
    %1149 = vmatpush1.msra.mxu0 0.0
    %1150 = vmatprep.subr.mxu0 0.0
    %1151 = vmatpush1.msra.mxu0 0.0
    %1152 = vmatprep.subr.mxu0 0.0
    %1153 = vmatpush1.msra.mxu0 0.0
    %1154 = vmatprep.subr.mxu0 0.0
    %1155 = vmatpush1.msra.mxu0 0.0
    %1156 = vmatprep.subr.mxu0 0.0
    %1157 = vmatpush1.msra.mxu0 0.0
    %1158 = vmatprep.subr.mxu0 0.0
    %1159 = vmatpush1.msra.mxu0 0.0
    %1160 = vmatprep.subr.mxu0 0.0
    %1161 = vmatpush1.msra.mxu0 0.0
    %1162 = vmatprep.subr.mxu0 0.0
    %1163 = vmatpush1.msra.mxu0 0.0
    %1164 = vmatprep.subr.mxu0 0.0
    %1165 = vmatpush1.msra.mxu0 0.0
    %1166 = vmatprep.subr.mxu0 0.0
    %1167 = vmatpush1.msra.mxu0 0.0
    %1168 = vmatprep.subr.mxu0 0.0
    %1169 = vmatpush1.msra.mxu0 0.0
    %1170 = vmatprep.subr.mxu0 0.0
    %1171 = vmatpush1.msra.mxu0 %v981
    %1172 = vmatprep.subr.mxu0 0.0
    %1173 = vmatpush2.msra.mxu0 0.0
    %1174 = vmatprep.subr.mxu0 0.0
    %1175 = vmatpush2.msra.mxu0 0.0
    %1176 = vmatprep.subr.mxu0 0.0
    %1177 = vmatpush2.msra.mxu0 0.0
    %1178 = vmatprep.subr.mxu0 0.0
    %1179 = vmatpush2.msra.mxu0 0.0
    %1180 = vmatprep.subr.mxu0 0.0
    %1181 = vmatpush2.msra.mxu0 0.0
    %1182 = vmatprep.subr.mxu0 0.0
    %1183 = vmatpush2.msra.mxu0 0.0
    %1184 = vmatprep.subr.mxu0 0.0
    %1185 = vmatpush2.msra.mxu0 0.0
    %1186 = vmatprep.subr.mxu0 0.0
    %1187 = vmatpush2.msra.mxu0 0.0
    %1188 = vmatprep.subr.mxu0 0.0
    %1189 = vmatpush2.msra.mxu0 0.0
    %1190 = vmatprep.subr.mxu0 0.0
    %1191 = vmatpush2.msra.mxu0 0.0
    %1192 = vmatprep.subr.mxu0 0.0
    %1193 = vmatpush2.msra.mxu0 0.0
    %1194 = vmatprep.subr.mxu0 0.0
    %1195 = vmatpush2.msra.mxu0 0.0
    %1196 = vmatprep.subr.mxu0 0.0
    %1197 = vmatpush2.msra.mxu0 0.0
    %1198 = vmatprep.subr.mxu0 0.0
    %1199 = vmatpush2.msra.mxu0 0.0
    %1200 = vmatprep.subr.mxu0 0.0
    %1201 = vmatpush2.msra.mxu0 0.0
    %1202 = vmatprep.subr.mxu0 0.0
    %1203 = vmatpush2.msra.mxu0 0.0
    %1204 = vmatprep.mubr.f32.mxu0 0.0
    %1205 = vmatmul.mubr.f32.gmra.mxu0 %v1138
    %v1206 = vpop.f32.mrf.mxu0
    %v1207 = vadd.f32 %v1134, %v1206
    %v1208 = vpop.f32.mrf.mxu0
    %1209 = vdwg.mxu0
    %1211 = vrot.lane.b32.xlu0 %v894, 48
    %v1212 = vpop.permute.xlu0 %1211
    %vm1214 = vcmask 458112
    %1215 = vst.msk [vmem:[#allocation8] sm:$0xff] %vm1214, %v1212
    %1216 = vrot.lane.b32.xlu0 %v157, 48
    %v1217 = vpop.permute.xlu0 %1216
    %v1219 = vsel %vm168, %v894, 0
    %1221 = vmatprep.subr.mxu0 0.0
    %1222 = vmatpush1.msra.mxu0 0.0
    %1223 = vmatprep.subr.mxu0 0.0
    %1224 = vmatpush1.msra.mxu0 0.0
    %1225 = vmatprep.subr.mxu0 0.0
    %1226 = vmatpush1.msra.mxu0 0.0
    %1227 = vmatprep.subr.mxu0 0.0
    %1228 = vmatpush1.msra.mxu0 0.0
    %1229 = vmatprep.subr.mxu0 0.0
    %1230 = vmatpush1.msra.mxu0 0.0
    %1231 = vmatprep.subr.mxu0 0.0
    %1232 = vmatpush1.msra.mxu0 0.0
    %1233 = vmatprep.subr.mxu0 0.0
    %1234 = vmatpush1.msra.mxu0 0.0
    %1235 = vmatprep.subr.mxu0 0.0
    %1236 = vmatpush1.msra.mxu0 0.0
    %1237 = vmatprep.subr.mxu0 0.0
    %1238 = vmatpush1.msra.mxu0 0.0
    %1239 = vmatprep.subr.mxu0 0.0
    %1240 = vmatpush1.msra.mxu0 0.0
    %1241 = vmatprep.subr.mxu0 0.0
    %1242 = vmatpush1.msra.mxu0 0.0
    %1243 = vmatprep.subr.mxu0 0.0
    %1244 = vmatpush1.msra.mxu0 0.0
    %1245 = vmatprep.subr.mxu0 0.0
    %1246 = vmatpush1.msra.mxu0 0.0
    %1247 = vmatprep.subr.mxu0 0.0
    %1248 = vmatpush1.msra.mxu0 0.0
    %1249 = vmatprep.subr.mxu0 0.0
    %1250 = vmatpush1.msra.mxu0 0.0
    %1251 = vmatprep.subr.mxu0 0.0
    %1252 = vmatpush1.msra.mxu0 %v1217
    %1253 = vmatprep.subr.mxu0 0.0
    %1254 = vmatpush2.msra.mxu0 0.0
    %1255 = vmatprep.subr.mxu0 0.0
    %1256 = vmatpush2.msra.mxu0 0.0
    %1257 = vmatprep.subr.mxu0 0.0
    %1258 = vmatpush2.msra.mxu0 0.0
    %1259 = vmatprep.subr.mxu0 0.0
    %1260 = vmatpush2.msra.mxu0 0.0
    %1261 = vmatprep.subr.mxu0 0.0
    %1262 = vmatpush2.msra.mxu0 0.0
    %1263 = vmatprep.subr.mxu0 0.0
    %1264 = vmatpush2.msra.mxu0 0.0
    %1265 = vmatprep.subr.mxu0 0.0
    %1266 = vmatpush2.msra.mxu0 0.0
    %1267 = vmatprep.subr.mxu0 0.0
    %1268 = vmatpush2.msra.mxu0 0.0
    %1269 = vmatprep.subr.mxu0 0.0
    %1270 = vmatpush2.msra.mxu0 0.0
    %1271 = vmatprep.subr.mxu0 0.0
    %1272 = vmatpush2.msra.mxu0 0.0
    %1273 = vmatprep.subr.mxu0 0.0
    %1274 = vmatpush2.msra.mxu0 0.0
    %1275 = vmatprep.subr.mxu0 0.0
    %1276 = vmatpush2.msra.mxu0 0.0
    %1277 = vmatprep.subr.mxu0 0.0
    %1278 = vmatpush2.msra.mxu0 0.0
    %1279 = vmatprep.subr.mxu0 0.0
    %1280 = vmatpush2.msra.mxu0 0.0
    %1281 = vmatprep.subr.mxu0 0.0
    %1282 = vmatpush2.msra.mxu0 0.0
    %1283 = vmatprep.subr.mxu0 0.0
    %1284 = vmatpush2.msra.mxu0 0.0
    %1285 = vmatprep.mubr.f32.mxu0 0.0
    %1286 = vmatmul.mubr.f32.gmra.mxu0 %v1219
    %v1287 = vpop.f32.mrf.mxu0
    %v1288 = vadd.f32 0.0, %v1287
    %v1289 = vpop.f32.mrf.mxu0
    %1290 = vdwg.mxu0
    %v1291 = vld [vmem:[#allocation7 + $0x10] sm:$0xff]
    %v1293 = vsel %vm168, %v1288, 0
    %1295 = vmatprep.subr.mxu0 0.0
    %1296 = vmatpush1.msra.mxu0 0.0
    %1297 = vmatprep.subr.mxu0 0.0
    %1298 = vmatpush1.msra.mxu0 0.0
    %1299 = vmatprep.subr.mxu0 0.0
    %1300 = vmatpush1.msra.mxu0 0.0
    %1301 = vmatprep.subr.mxu0 0.0
    %1302 = vmatpush1.msra.mxu0 0.0
    %1303 = vmatprep.subr.mxu0 0.0
    %1304 = vmatpush1.msra.mxu0 0.0
    %1305 = vmatprep.subr.mxu0 0.0
    %1306 = vmatpush1.msra.mxu0 0.0
    %1307 = vmatprep.subr.mxu0 0.0
    %1308 = vmatpush1.msra.mxu0 0.0
    %1309 = vmatprep.subr.mxu0 0.0
    %1310 = vmatpush1.msra.mxu0 0.0
    %1311 = vmatprep.subr.mxu0 0.0
    %1312 = vmatpush1.msra.mxu0 0.0
    %1313 = vmatprep.subr.mxu0 0.0
    %1314 = vmatpush1.msra.mxu0 0.0
    %1315 = vmatprep.subr.mxu0 0.0
    %1316 = vmatpush1.msra.mxu0 0.0
    %1317 = vmatprep.subr.mxu0 0.0
    %1318 = vmatpush1.msra.mxu0 0.0
    %1319 = vmatprep.subr.mxu0 0.0
    %1320 = vmatpush1.msra.mxu0 0.0
    %1321 = vmatprep.subr.mxu0 0.0
    %1322 = vmatpush1.msra.mxu0 0.0
    %1323 = vmatprep.subr.mxu0 0.0
    %1324 = vmatpush1.msra.mxu0 0.0
    %1325 = vmatprep.subr.mxu0 0.0
    %1326 = vmatpush1.msra.mxu0 %v1291
    %1327 = vmatprep.subr.mxu0 0.0
    %1328 = vmatpush2.msra.mxu0 0.0
    %1329 = vmatprep.subr.mxu0 0.0
    %1330 = vmatpush2.msra.mxu0 0.0
    %1331 = vmatprep.subr.mxu0 0.0
    %1332 = vmatpush2.msra.mxu0 0.0
    %1333 = vmatprep.subr.mxu0 0.0
    %1334 = vmatpush2.msra.mxu0 0.0
    %1335 = vmatprep.subr.mxu0 0.0
    %1336 = vmatpush2.msra.mxu0 0.0
    %1337 = vmatprep.subr.mxu0 0.0
    %1338 = vmatpush2.msra.mxu0 0.0
    %1339 = vmatprep.subr.mxu0 0.0
    %1340 = vmatpush2.msra.mxu0 0.0
    %1341 = vmatprep.subr.mxu0 0.0
    %1342 = vmatpush2.msra.mxu0 0.0
    %1343 = vmatprep.subr.mxu0 0.0
    %1344 = vmatpush2.msra.mxu0 0.0
    %1345 = vmatprep.subr.mxu0 0.0
    %1346 = vmatpush2.msra.mxu0 0.0
    %1347 = vmatprep.subr.mxu0 0.0
    %1348 = vmatpush2.msra.mxu0 0.0
    %1349 = vmatprep.subr.mxu0 0.0
    %1350 = vmatpush2.msra.mxu0 0.0
    %1351 = vmatprep.subr.mxu0 0.0
    %1352 = vmatpush2.msra.mxu0 0.0
    %1353 = vmatprep.subr.mxu0 0.0
    %1354 = vmatpush2.msra.mxu0 0.0
    %1355 = vmatprep.subr.mxu0 0.0
    %1356 = vmatpush2.msra.mxu0 0.0
    %1357 = vmatprep.subr.mxu0 0.0
    %1358 = vmatpush2.msra.mxu0 0.0
    %1359 = vmatprep.mubr.f32.mxu0 0.0
    %1360 = vmatmul.mubr.f32.gmra.mxu0 %v1293
    %v1361 = vpop.f32.mrf.mxu0
    %v1362 = vadd.f32 0.0, %v1361
    %v1363 = vpop.f32.mrf.mxu0
    %1364 = vdwg.mxu0
    %v1365 = vadd.f32 %v1207, %v1362
    %1367 = vrot.lane.b32.xlu0 %v895, 56
    %v1368 = vpop.permute.xlu0 %1367
    %vm1370 = vcmask 523712
    %1371 = vst.msk [vmem:[#allocation8] sm:$0xff] %vm1370, %v1368
    %1372 = vrot.lane.b32.xlu0 %v157, 40
    %v1373 = vpop.permute.xlu0 %1372
    %v1375 = vsel %vm168, %v895, 0
    %1377 = vmatprep.subr.mxu0 0.0
    %1378 = vmatpush1.msra.mxu0 0.0
    %1379 = vmatprep.subr.mxu0 0.0
    %1380 = vmatpush1.msra.mxu0 0.0
    %1381 = vmatprep.subr.mxu0 0.0
    %1382 = vmatpush1.msra.mxu0 0.0
    %1383 = vmatprep.subr.mxu0 0.0
    %1384 = vmatpush1.msra.mxu0 0.0
    %1385 = vmatprep.subr.mxu0 0.0
    %1386 = vmatpush1.msra.mxu0 0.0
    %1387 = vmatprep.subr.mxu0 0.0
    %1388 = vmatpush1.msra.mxu0 0.0
    %1389 = vmatprep.subr.mxu0 0.0
    %1390 = vmatpush1.msra.mxu0 0.0
    %1391 = vmatprep.subr.mxu0 0.0
    %1392 = vmatpush1.msra.mxu0 0.0
    %1393 = vmatprep.subr.mxu0 0.0
    %1394 = vmatpush1.msra.mxu0 0.0
    %1395 = vmatprep.subr.mxu0 0.0
    %1396 = vmatpush1.msra.mxu0 0.0
    %1397 = vmatprep.subr.mxu0 0.0
    %1398 = vmatpush1.msra.mxu0 0.0
    %1399 = vmatprep.subr.mxu0 0.0
    %1400 = vmatpush1.msra.mxu0 0.0
    %1401 = vmatprep.subr.mxu0 0.0
    %1402 = vmatpush1.msra.mxu0 0.0
    %1403 = vmatprep.subr.mxu0 0.0
    %1404 = vmatpush1.msra.mxu0 0.0
    %1405 = vmatprep.subr.mxu0 0.0
    %1406 = vmatpush1.msra.mxu0 0.0
    %1407 = vmatprep.subr.mxu0 0.0
    %1408 = vmatpush1.msra.mxu0 %v1373
    %1409 = vmatprep.subr.mxu0 0.0
    %1410 = vmatpush2.msra.mxu0 0.0
    %1411 = vmatprep.subr.mxu0 0.0
    %1412 = vmatpush2.msra.mxu0 0.0
    %1413 = vmatprep.subr.mxu0 0.0
    %1414 = vmatpush2.msra.mxu0 0.0
    %1415 = vmatprep.subr.mxu0 0.0
    %1416 = vmatpush2.msra.mxu0 0.0
    %1417 = vmatprep.subr.mxu0 0.0
    %1418 = vmatpush2.msra.mxu0 0.0
    %1419 = vmatprep.subr.mxu0 0.0
    %1420 = vmatpush2.msra.mxu0 0.0
    %1421 = vmatprep.subr.mxu0 0.0
    %1422 = vmatpush2.msra.mxu0 0.0
    %1423 = vmatprep.subr.mxu0 0.0
    %1424 = vmatpush2.msra.mxu0 0.0
    %1425 = vmatprep.subr.mxu0 0.0
    %1426 = vmatpush2.msra.mxu0 0.0
    %1427 = vmatprep.subr.mxu0 0.0
    %1428 = vmatpush2.msra.mxu0 0.0
    %1429 = vmatprep.subr.mxu0 0.0
    %1430 = vmatpush2.msra.mxu0 0.0
    %1431 = vmatprep.subr.mxu0 0.0
    %1432 = vmatpush2.msra.mxu0 0.0
    %1433 = vmatprep.subr.mxu0 0.0
    %1434 = vmatpush2.msra.mxu0 0.0
    %1435 = vmatprep.subr.mxu0 0.0
    %1436 = vmatpush2.msra.mxu0 0.0
    %1437 = vmatprep.subr.mxu0 0.0
    %1438 = vmatpush2.msra.mxu0 0.0
    %1439 = vmatprep.subr.mxu0 0.0
    %1440 = vmatpush2.msra.mxu0 0.0
    %1441 = vmatprep.mubr.f32.mxu0 0.0
    %1442 = vmatmul.mubr.f32.gmra.mxu0 %v1375
    %v1443 = vpop.f32.mrf.mxu0
    %v1444 = vadd.f32 0.0, %v1443
    %v1445 = vpop.f32.mrf.mxu0
    %1446 = vdwg.mxu0
    %v1447 = vld [vmem:[#allocation7 + $0x18] sm:$0xff]
    %v1449 = vsel %vm168, %v1444, 0
    %1451 = vmatprep.subr.mxu0 0.0
    %1452 = vmatpush1.msra.mxu0 0.0
    %1453 = vmatprep.subr.mxu0 0.0
    %1454 = vmatpush1.msra.mxu0 0.0
    %1455 = vmatprep.subr.mxu0 0.0
    %1456 = vmatpush1.msra.mxu0 0.0
    %1457 = vmatprep.subr.mxu0 0.0
    %1458 = vmatpush1.msra.mxu0 0.0
    %1459 = vmatprep.subr.mxu0 0.0
    %1460 = vmatpush1.msra.mxu0 0.0
    %1461 = vmatprep.subr.mxu0 0.0
    %1462 = vmatpush1.msra.mxu0 0.0
    %1463 = vmatprep.subr.mxu0 0.0
    %1464 = vmatpush1.msra.mxu0 0.0
    %1465 = vmatprep.subr.mxu0 0.0
    %1466 = vmatpush1.msra.mxu0 0.0
    %1467 = vmatprep.subr.mxu0 0.0
    %1468 = vmatpush1.msra.mxu0 0.0
    %1469 = vmatprep.subr.mxu0 0.0
    %1470 = vmatpush1.msra.mxu0 0.0
    %1471 = vmatprep.subr.mxu0 0.0
    %1472 = vmatpush1.msra.mxu0 0.0
    %1473 = vmatprep.subr.mxu0 0.0
    %1474 = vmatpush1.msra.mxu0 0.0
    %1475 = vmatprep.subr.mxu0 0.0
    %1476 = vmatpush1.msra.mxu0 0.0
    %1477 = vmatprep.subr.mxu0 0.0
    %1478 = vmatpush1.msra.mxu0 0.0
    %1479 = vmatprep.subr.mxu0 0.0
    %1480 = vmatpush1.msra.mxu0 0.0
    %1481 = vmatprep.subr.mxu0 0.0
    %1482 = vmatpush1.msra.mxu0 %v1447
    %1483 = vmatprep.subr.mxu0 0.0
    %1484 = vmatpush2.msra.mxu0 0.0
    %1485 = vmatprep.subr.mxu0 0.0
    %1486 = vmatpush2.msra.mxu0 0.0
    %1487 = vmatprep.subr.mxu0 0.0
    %1488 = vmatpush2.msra.mxu0 0.0
    %1489 = vmatprep.subr.mxu0 0.0
    %1490 = vmatpush2.msra.mxu0 0.0
    %1491 = vmatprep.subr.mxu0 0.0
    %1492 = vmatpush2.msra.mxu0 0.0
    %1493 = vmatprep.subr.mxu0 0.0
    %1494 = vmatpush2.msra.mxu0 0.0
    %1495 = vmatprep.subr.mxu0 0.0
    %1496 = vmatpush2.msra.mxu0 0.0
    %1497 = vmatprep.subr.mxu0 0.0
    %1498 = vmatpush2.msra.mxu0 0.0
    %1499 = vmatprep.subr.mxu0 0.0
    %1500 = vmatpush2.msra.mxu0 0.0
    %1501 = vmatprep.subr.mxu0 0.0
    %1502 = vmatpush2.msra.mxu0 0.0
    %1503 = vmatprep.subr.mxu0 0.0
    %1504 = vmatpush2.msra.mxu0 0.0
    %1505 = vmatprep.subr.mxu0 0.0
    %1506 = vmatpush2.msra.mxu0 0.0
    %1507 = vmatprep.subr.mxu0 0.0
    %1508 = vmatpush2.msra.mxu0 0.0
    %1509 = vmatprep.subr.mxu0 0.0
    %1510 = vmatpush2.msra.mxu0 0.0
    %1511 = vmatprep.subr.mxu0 0.0
    %1512 = vmatpush2.msra.mxu0 0.0
    %1513 = vmatprep.subr.mxu0 0.0
    %1514 = vmatpush2.msra.mxu0 0.0
    %1515 = vmatprep.mubr.f32.mxu0 0.0
    %1516 = vmatmul.mubr.f32.gmra.mxu0 %v1449
    %v1517 = vpop.f32.mrf.mxu0
    %v1518 = vadd.f32 0.0, %v1517
    %v1519 = vpop.f32.mrf.mxu0
    %1520 = vdwg.mxu0
    %v1521 = vadd.f32 %v1365, %v1518
    %v1522 = vld [vmem:[%s4] sm:$0x1]
    %v1524 = vlaneseq
    %v1525 = vshrl.u32 %v1524, 7
    %v1526 = vsub.s32 0, %v1525
    %v1527 = vrot.slane %v1522, %v1526
    %v1529 = vadd.f32 %v1521, %v1527
    %vm1530 = vcmask 261120
    %1531 = vst.msk [vmem:[#allocation8] sm:$0xff] %vm1530, %v1529
    %1533 = vrot.lane.b32.xlu0 %v896, 32
    %v1534 = vpop.permute.xlu0 %1533
    %s1536 = scalar_lea.vmem [#allocation8], 8
    %1537 = vst.msk [vmem:[%s1536] sm:$0xff] %vm904, %v1534
    %1538 = vrot.lane.b32.xlu0 %v162, 64
    %v1539 = vpop.permute.xlu0 %1538
    %v1541 = vsel %vm168, %v896, 0
    %1543 = vmatprep.subr.mxu0 0.0
    %1544 = vmatpush1.msra.mxu0 0.0
    %1545 = vmatprep.subr.mxu0 0.0
    %1546 = vmatpush1.msra.mxu0 0.0
    %1547 = vmatprep.subr.mxu0 0.0
    %1548 = vmatpush1.msra.mxu0 0.0
    %1549 = vmatprep.subr.mxu0 0.0
    %1550 = vmatpush1.msra.mxu0 0.0
    %1551 = vmatprep.subr.mxu0 0.0
    %1552 = vmatpush1.msra.mxu0 0.0
    %1553 = vmatprep.subr.mxu0 0.0
    %1554 = vmatpush1.msra.mxu0 0.0
    %1555 = vmatprep.subr.mxu0 0.0
    %1556 = vmatpush1.msra.mxu0 0.0
    %1557 = vmatprep.subr.mxu0 0.0
    %1558 = vmatpush1.msra.mxu0 0.0
    %1559 = vmatprep.subr.mxu0 0.0
    %1560 = vmatpush1.msra.mxu0 0.0
    %1561 = vmatprep.subr.mxu0 0.0
    %1562 = vmatpush1.msra.mxu0 0.0
    %1563 = vmatprep.subr.mxu0 0.0
    %1564 = vmatpush1.msra.mxu0 0.0
    %1565 = vmatprep.subr.mxu0 0.0
    %1566 = vmatpush1.msra.mxu0 0.0
    %1567 = vmatprep.subr.mxu0 0.0
    %1568 = vmatpush1.msra.mxu0 0.0
    %1569 = vmatprep.subr.mxu0 0.0
    %1570 = vmatpush1.msra.mxu0 0.0
    %1571 = vmatprep.subr.mxu0 0.0
    %1572 = vmatpush1.msra.mxu0 0.0
    %1573 = vmatprep.subr.mxu0 0.0
    %1574 = vmatpush1.msra.mxu0 %v1539
    %1575 = vmatprep.subr.mxu0 0.0
    %1576 = vmatpush2.msra.mxu0 0.0
    %1577 = vmatprep.subr.mxu0 0.0
    %1578 = vmatpush2.msra.mxu0 0.0
    %1579 = vmatprep.subr.mxu0 0.0
    %1580 = vmatpush2.msra.mxu0 0.0
    %1581 = vmatprep.subr.mxu0 0.0
    %1582 = vmatpush2.msra.mxu0 0.0
    %1583 = vmatprep.subr.mxu0 0.0
    %1584 = vmatpush2.msra.mxu0 0.0
    %1585 = vmatprep.subr.mxu0 0.0
    %1586 = vmatpush2.msra.mxu0 0.0
    %1587 = vmatprep.subr.mxu0 0.0
    %1588 = vmatpush2.msra.mxu0 0.0
    %1589 = vmatprep.subr.mxu0 0.0
    %1590 = vmatpush2.msra.mxu0 0.0
    %1591 = vmatprep.subr.mxu0 0.0
    %1592 = vmatpush2.msra.mxu0 0.0
    %1593 = vmatprep.subr.mxu0 0.0
    %1594 = vmatpush2.msra.mxu0 0.0
    %1595 = vmatprep.subr.mxu0 0.0
    %1596 = vmatpush2.msra.mxu0 0.0
    %1597 = vmatprep.subr.mxu0 0.0
    %1598 = vmatpush2.msra.mxu0 0.0
    %1599 = vmatprep.subr.mxu0 0.0
    %1600 = vmatpush2.msra.mxu0 0.0
    %1601 = vmatprep.subr.mxu0 0.0
    %1602 = vmatpush2.msra.mxu0 0.0
    %1603 = vmatprep.subr.mxu0 0.0
    %1604 = vmatpush2.msra.mxu0 0.0
    %1605 = vmatprep.subr.mxu0 0.0
    %1606 = vmatpush2.msra.mxu0 0.0
    %1607 = vmatprep.mubr.f32.mxu0 0.0
    %1608 = vmatmul.mubr.f32.gmra.mxu0 %v1541
    %v1609 = vpop.f32.mrf.mxu0
    %v1610 = vadd.f32 0.0, %v1609
    %v1611 = vpop.f32.mrf.mxu0
    %1612 = vdwg.mxu0
    %v1613 = vld [vmem:[#allocation7] sm:$0xff]
    %1615 = vrot.lane.b32.xlu0 %v897, 40
    %v1616 = vpop.permute.xlu0 %1615
    %1618 = vst.msk [vmem:[%s1536] sm:$0xff] %vm986, %v1616
    %1619 = vrot.lane.b32.xlu0 %v162, 56
    %v1620 = vpop.permute.xlu0 %1619
    %v1622 = vsel %vm168, %v897, 0
    %1624 = vmatprep.subr.mxu0 0.0
    %1625 = vmatpush1.msra.mxu0 0.0
    %1626 = vmatprep.subr.mxu0 0.0
    %1627 = vmatpush1.msra.mxu0 0.0
    %1628 = vmatprep.subr.mxu0 0.0
    %1629 = vmatpush1.msra.mxu0 0.0
    %1630 = vmatprep.subr.mxu0 0.0
    %1631 = vmatpush1.msra.mxu0 0.0
    %1632 = vmatprep.subr.mxu0 0.0
    %1633 = vmatpush1.msra.mxu0 0.0
    %1634 = vmatprep.subr.mxu0 0.0
    %1635 = vmatpush1.msra.mxu0 0.0
    %1636 = vmatprep.subr.mxu0 0.0
    %1637 = vmatpush1.msra.mxu0 0.0
    %1638 = vmatprep.subr.mxu0 0.0
    %1639 = vmatpush1.msra.mxu0 0.0
    %1640 = vmatprep.subr.mxu0 0.0
    %1641 = vmatpush1.msra.mxu0 0.0
    %1642 = vmatprep.subr.mxu0 0.0
    %1643 = vmatpush1.msra.mxu0 0.0
    %1644 = vmatprep.subr.mxu0 0.0
    %1645 = vmatpush1.msra.mxu0 0.0
    %1646 = vmatprep.subr.mxu0 0.0
    %1647 = vmatpush1.msra.mxu0 0.0
    %1648 = vmatprep.subr.mxu0 0.0
    %1649 = vmatpush1.msra.mxu0 0.0
    %1650 = vmatprep.subr.mxu0 0.0
    %1651 = vmatpush1.msra.mxu0 0.0
    %1652 = vmatprep.subr.mxu0 0.0
    %1653 = vmatpush1.msra.mxu0 0.0
    %1654 = vmatprep.subr.mxu0 0.0
    %1655 = vmatpush1.msra.mxu0 %v1620
    %1656 = vmatprep.subr.mxu0 0.0
    %1657 = vmatpush2.msra.mxu0 0.0
    %1658 = vmatprep.subr.mxu0 0.0
    %1659 = vmatpush2.msra.mxu0 0.0
    %1660 = vmatprep.subr.mxu0 0.0
    %1661 = vmatpush2.msra.mxu0 0.0
    %1662 = vmatprep.subr.mxu0 0.0
    %1663 = vmatpush2.msra.mxu0 0.0
    %1664 = vmatprep.subr.mxu0 0.0
    %1665 = vmatpush2.msra.mxu0 0.0
    %1666 = vmatprep.subr.mxu0 0.0
    %1667 = vmatpush2.msra.mxu0 0.0
    %1668 = vmatprep.subr.mxu0 0.0
    %1669 = vmatpush2.msra.mxu0 0.0
    %1670 = vmatprep.subr.mxu0 0.0
    %1671 = vmatpush2.msra.mxu0 0.0
    %1672 = vmatprep.subr.mxu0 0.0
    %1673 = vmatpush2.msra.mxu0 0.0
    %1674 = vmatprep.subr.mxu0 0.0
    %1675 = vmatpush2.msra.mxu0 0.0
    %1676 = vmatprep.subr.mxu0 0.0
    %1677 = vmatpush2.msra.mxu0 0.0
    %1678 = vmatprep.subr.mxu0 0.0
    %1679 = vmatpush2.msra.mxu0 0.0
    %1680 = vmatprep.subr.mxu0 0.0
    %1681 = vmatpush2.msra.mxu0 0.0
    %1682 = vmatprep.subr.mxu0 0.0
    %1683 = vmatpush2.msra.mxu0 0.0
    %1684 = vmatprep.subr.mxu0 0.0
    %1685 = vmatpush2.msra.mxu0 0.0
    %1686 = vmatprep.subr.mxu0 0.0
    %1687 = vmatpush2.msra.mxu0 0.0
    %1688 = vmatprep.mubr.f32.mxu0 0.0
    %1689 = vmatmul.mubr.f32.gmra.mxu0 %v1622
    %v1690 = vpop.f32.mrf.mxu0
    %v1691 = vadd.f32 0.0, %v1690
    %v1692 = vpop.f32.mrf.mxu0
    %1693 = vdwg.mxu0
    %v1694 = vld [vmem:[#allocation7 + $0x8] sm:$0xff]
    %v1696 = vsel %vm168, %v1691, 0
    %1698 = vmatprep.subr.mxu0 0.0
    %1699 = vmatpush1.msra.mxu0 0.0
    %1700 = vmatprep.subr.mxu0 0.0
    %1701 = vmatpush1.msra.mxu0 0.0
    %1702 = vmatprep.subr.mxu0 0.0
    %1703 = vmatpush1.msra.mxu0 0.0
    %1704 = vmatprep.subr.mxu0 0.0
    %1705 = vmatpush1.msra.mxu0 0.0
    %1706 = vmatprep.subr.mxu0 0.0
    %1707 = vmatpush1.msra.mxu0 0.0
    %1708 = vmatprep.subr.mxu0 0.0
    %1709 = vmatpush1.msra.mxu0 0.0
    %1710 = vmatprep.subr.mxu0 0.0
    %1711 = vmatpush1.msra.mxu0 0.0
    %1712 = vmatprep.subr.mxu0 0.0
    %1713 = vmatpush1.msra.mxu0 0.0
    %1714 = vmatprep.subr.mxu0 0.0
    %1715 = vmatpush1.msra.mxu0 0.0
    %1716 = vmatprep.subr.mxu0 0.0
    %1717 = vmatpush1.msra.mxu0 0.0
    %1718 = vmatprep.subr.mxu0 0.0
    %1719 = vmatpush1.msra.mxu0 0.0
    %1720 = vmatprep.subr.mxu0 0.0
    %1721 = vmatpush1.msra.mxu0 0.0
    %1722 = vmatprep.subr.mxu0 0.0
    %1723 = vmatpush1.msra.mxu0 0.0
    %1724 = vmatprep.subr.mxu0 0.0
    %1725 = vmatpush1.msra.mxu0 0.0
    %1726 = vmatprep.subr.mxu0 0.0
    %1727 = vmatpush1.msra.mxu0 0.0
    %1728 = vmatprep.subr.mxu0 0.0
    %1729 = vmatpush1.msra.mxu0 %v1694
    %1730 = vmatprep.subr.mxu0 0.0
    %1731 = vmatpush2.msra.mxu0 0.0
    %1732 = vmatprep.subr.mxu0 0.0
    %1733 = vmatpush2.msra.mxu0 0.0
    %1734 = vmatprep.subr.mxu0 0.0
    %1735 = vmatpush2.msra.mxu0 0.0
    %1736 = vmatprep.subr.mxu0 0.0
    %1737 = vmatpush2.msra.mxu0 0.0
    %1738 = vmatprep.subr.mxu0 0.0
    %1739 = vmatpush2.msra.mxu0 0.0
    %1740 = vmatprep.subr.mxu0 0.0
    %1741 = vmatpush2.msra.mxu0 0.0
    %1742 = vmatprep.subr.mxu0 0.0
    %1743 = vmatpush2.msra.mxu0 0.0
    %1744 = vmatprep.subr.mxu0 0.0
    %1745 = vmatpush2.msra.mxu0 0.0
    %1746 = vmatprep.subr.mxu0 0.0
    %1747 = vmatpush2.msra.mxu0 0.0
    %1748 = vmatprep.subr.mxu0 0.0
    %1749 = vmatpush2.msra.mxu0 0.0
    %1750 = vmatprep.subr.mxu0 0.0
    %1751 = vmatpush2.msra.mxu0 0.0
    %1752 = vmatprep.subr.mxu0 0.0
    %1753 = vmatpush2.msra.mxu0 0.0
    %1754 = vmatprep.subr.mxu0 0.0
    %1755 = vmatpush2.msra.mxu0 0.0
    %1756 = vmatprep.subr.mxu0 0.0
    %1757 = vmatpush2.msra.mxu0 0.0
    %1758 = vmatprep.subr.mxu0 0.0
    %1759 = vmatpush2.msra.mxu0 0.0
    %1760 = vmatprep.subr.mxu0 0.0
    %1761 = vmatpush2.msra.mxu0 0.0
    %1762 = vmatprep.mubr.f32.mxu0 0.0
    %1763 = vmatmul.mubr.f32.gmra.mxu0 %v1696
    %v1764 = vpop.f32.mrf.mxu0
    %v1765 = vadd.f32 0.0, %v1764
    %v1766 = vpop.f32.mrf.mxu0
    %1767 = vdwg.mxu0
    %v1769 = vsel %vm168, %v1610, 0
    %1771 = vmatprep.subr.mxu0 0.0
    %1772 = vmatpush1.msra.mxu0 0.0
    %1773 = vmatprep.subr.mxu0 0.0
    %1774 = vmatpush1.msra.mxu0 0.0
    %1775 = vmatprep.subr.mxu0 0.0
    %1776 = vmatpush1.msra.mxu0 0.0
    %1777 = vmatprep.subr.mxu0 0.0
    %1778 = vmatpush1.msra.mxu0 0.0
    %1779 = vmatprep.subr.mxu0 0.0
    %1780 = vmatpush1.msra.mxu0 0.0
    %1781 = vmatprep.subr.mxu0 0.0
    %1782 = vmatpush1.msra.mxu0 0.0
    %1783 = vmatprep.subr.mxu0 0.0
    %1784 = vmatpush1.msra.mxu0 0.0
    %1785 = vmatprep.subr.mxu0 0.0
    %1786 = vmatpush1.msra.mxu0 0.0
    %1787 = vmatprep.subr.mxu0 0.0
    %1788 = vmatpush1.msra.mxu0 0.0
    %1789 = vmatprep.subr.mxu0 0.0
    %1790 = vmatpush1.msra.mxu0 0.0
    %1791 = vmatprep.subr.mxu0 0.0
    %1792 = vmatpush1.msra.mxu0 0.0
    %1793 = vmatprep.subr.mxu0 0.0
    %1794 = vmatpush1.msra.mxu0 0.0
    %1795 = vmatprep.subr.mxu0 0.0
    %1796 = vmatpush1.msra.mxu0 0.0
    %1797 = vmatprep.subr.mxu0 0.0
    %1798 = vmatpush1.msra.mxu0 0.0
    %1799 = vmatprep.subr.mxu0 0.0
    %1800 = vmatpush1.msra.mxu0 0.0
    %1801 = vmatprep.subr.mxu0 0.0
    %1802 = vmatpush1.msra.mxu0 %v1613
    %1803 = vmatprep.subr.mxu0 0.0
    %1804 = vmatpush2.msra.mxu0 0.0
    %1805 = vmatprep.subr.mxu0 0.0
    %1806 = vmatpush2.msra.mxu0 0.0
    %1807 = vmatprep.subr.mxu0 0.0
    %1808 = vmatpush2.msra.mxu0 0.0
    %1809 = vmatprep.subr.mxu0 0.0
    %1810 = vmatpush2.msra.mxu0 0.0
    %1811 = vmatprep.subr.mxu0 0.0
    %1812 = vmatpush2.msra.mxu0 0.0
    %1813 = vmatprep.subr.mxu0 0.0
    %1814 = vmatpush2.msra.mxu0 0.0
    %1815 = vmatprep.subr.mxu0 0.0
    %1816 = vmatpush2.msra.mxu0 0.0
    %1817 = vmatprep.subr.mxu0 0.0
    %1818 = vmatpush2.msra.mxu0 0.0
    %1819 = vmatprep.subr.mxu0 0.0
    %1820 = vmatpush2.msra.mxu0 0.0
    %1821 = vmatprep.subr.mxu0 0.0
    %1822 = vmatpush2.msra.mxu0 0.0
    %1823 = vmatprep.subr.mxu0 0.0
    %1824 = vmatpush2.msra.mxu0 0.0
    %1825 = vmatprep.subr.mxu0 0.0
    %1826 = vmatpush2.msra.mxu0 0.0
    %1827 = vmatprep.subr.mxu0 0.0
    %1828 = vmatpush2.msra.mxu0 0.0
    %1829 = vmatprep.subr.mxu0 0.0
    %1830 = vmatpush2.msra.mxu0 0.0
    %1831 = vmatprep.subr.mxu0 0.0
    %1832 = vmatpush2.msra.mxu0 0.0
    %1833 = vmatprep.subr.mxu0 0.0
    %1834 = vmatpush2.msra.mxu0 0.0
    %1835 = vmatprep.mubr.f32.mxu0 0.0
    %1836 = vmatmul.mubr.f32.gmra.mxu0 %v1769
    %v1837 = vpop.f32.mrf.mxu0
    %v1838 = vadd.f32 %v1765, %v1837
    %v1839 = vpop.f32.mrf.mxu0
    %1840 = vdwg.mxu0
    %1842 = vrot.lane.b32.xlu0 %v898, 48
    %v1843 = vpop.permute.xlu0 %1842
    %1845 = vst.msk [vmem:[%s1536] sm:$0xff] %vm1214, %v1843
    %1846 = vrot.lane.b32.xlu0 %v162, 48
    %v1847 = vpop.permute.xlu0 %1846
    %v1849 = vsel %vm168, %v898, 0
    %1851 = vmatprep.subr.mxu0 0.0
    %1852 = vmatpush1.msra.mxu0 0.0
    %1853 = vmatprep.subr.mxu0 0.0
    %1854 = vmatpush1.msra.mxu0 0.0
    %1855 = vmatprep.subr.mxu0 0.0
    %1856 = vmatpush1.msra.mxu0 0.0
    %1857 = vmatprep.subr.mxu0 0.0
    %1858 = vmatpush1.msra.mxu0 0.0
    %1859 = vmatprep.subr.mxu0 0.0
    %1860 = vmatpush1.msra.mxu0 0.0
    %1861 = vmatprep.subr.mxu0 0.0
    %1862 = vmatpush1.msra.mxu0 0.0
    %1863 = vmatprep.subr.mxu0 0.0
    %1864 = vmatpush1.msra.mxu0 0.0
    %1865 = vmatprep.subr.mxu0 0.0
    %1866 = vmatpush1.msra.mxu0 0.0
    %1867 = vmatprep.subr.mxu0 0.0
    %1868 = vmatpush1.msra.mxu0 0.0
    %1869 = vmatprep.subr.mxu0 0.0
    %1870 = vmatpush1.msra.mxu0 0.0
    %1871 = vmatprep.subr.mxu0 0.0
    %1872 = vmatpush1.msra.mxu0 0.0
    %1873 = vmatprep.subr.mxu0 0.0
    %1874 = vmatpush1.msra.mxu0 0.0
    %1875 = vmatprep.subr.mxu0 0.0
    %1876 = vmatpush1.msra.mxu0 0.0
    %1877 = vmatprep.subr.mxu0 0.0
    %1878 = vmatpush1.msra.mxu0 0.0
    %1879 = vmatprep.subr.mxu0 0.0
    %1880 = vmatpush1.msra.mxu0 0.0
    %1881 = vmatprep.subr.mxu0 0.0
    %1882 = vmatpush1.msra.mxu0 %v1847
    %1883 = vmatprep.subr.mxu0 0.0
    %1884 = vmatpush2.msra.mxu0 0.0
    %1885 = vmatprep.subr.mxu0 0.0
    %1886 = vmatpush2.msra.mxu0 0.0
    %1887 = vmatprep.subr.mxu0 0.0
    %1888 = vmatpush2.msra.mxu0 0.0
    %1889 = vmatprep.subr.mxu0 0.0
    %1890 = vmatpush2.msra.mxu0 0.0
    %1891 = vmatprep.subr.mxu0 0.0
    %1892 = vmatpush2.msra.mxu0 0.0
    %1893 = vmatprep.subr.mxu0 0.0
    %1894 = vmatpush2.msra.mxu0 0.0
    %1895 = vmatprep.subr.mxu0 0.0
    %1896 = vmatpush2.msra.mxu0 0.0
    %1897 = vmatprep.subr.mxu0 0.0
    %1898 = vmatpush2.msra.mxu0 0.0
    %1899 = vmatprep.subr.mxu0 0.0
    %1900 = vmatpush2.msra.mxu0 0.0
    %1901 = vmatprep.subr.mxu0 0.0
    %1902 = vmatpush2.msra.mxu0 0.0
    %1903 = vmatprep.subr.mxu0 0.0
    %1904 = vmatpush2.msra.mxu0 0.0
    %1905 = vmatprep.subr.mxu0 0.0
    %1906 = vmatpush2.msra.mxu0 0.0
    %1907 = vmatprep.subr.mxu0 0.0
    %1908 = vmatpush2.msra.mxu0 0.0
    %1909 = vmatprep.subr.mxu0 0.0
    %1910 = vmatpush2.msra.mxu0 0.0
    %1911 = vmatprep.subr.mxu0 0.0
    %1912 = vmatpush2.msra.mxu0 0.0
    %1913 = vmatprep.subr.mxu0 0.0
    %1914 = vmatpush2.msra.mxu0 0.0
    %1915 = vmatprep.mubr.f32.mxu0 0.0
    %1916 = vmatmul.mubr.f32.gmra.mxu0 %v1849
    %v1917 = vpop.f32.mrf.mxu0
    %v1918 = vadd.f32 0.0, %v1917
    %v1919 = vpop.f32.mrf.mxu0
    %1920 = vdwg.mxu0
    %v1921 = vld [vmem:[#allocation7 + $0x10] sm:$0xff]
    %v1923 = vsel %vm168, %v1918, 0
    %1925 = vmatprep.subr.mxu0 0.0
    %1926 = vmatpush1.msra.mxu0 0.0
    %1927 = vmatprep.subr.mxu0 0.0
    %1928 = vmatpush1.msra.mxu0 0.0
    %1929 = vmatprep.subr.mxu0 0.0
    %1930 = vmatpush1.msra.mxu0 0.0
    %1931 = vmatprep.subr.mxu0 0.0
    %1932 = vmatpush1.msra.mxu0 0.0
    %1933 = vmatprep.subr.mxu0 0.0
    %1934 = vmatpush1.msra.mxu0 0.0
    %1935 = vmatprep.subr.mxu0 0.0
    %1936 = vmatpush1.msra.mxu0 0.0
    %1937 = vmatprep.subr.mxu0 0.0
    %1938 = vmatpush1.msra.mxu0 0.0
    %1939 = vmatprep.subr.mxu0 0.0
    %1940 = vmatpush1.msra.mxu0 0.0
    %1941 = vmatprep.subr.mxu0 0.0
    %1942 = vmatpush1.msra.mxu0 0.0
    %1943 = vmatprep.subr.mxu0 0.0
    %1944 = vmatpush1.msra.mxu0 0.0
    %1945 = vmatprep.subr.mxu0 0.0
    %1946 = vmatpush1.msra.mxu0 0.0
    %1947 = vmatprep.subr.mxu0 0.0
    %1948 = vmatpush1.msra.mxu0 0.0
    %1949 = vmatprep.subr.mxu0 0.0
    %1950 = vmatpush1.msra.mxu0 0.0
    %1951 = vmatprep.subr.mxu0 0.0
    %1952 = vmatpush1.msra.mxu0 0.0
    %1953 = vmatprep.subr.mxu0 0.0
    %1954 = vmatpush1.msra.mxu0 0.0
    %1955 = vmatprep.subr.mxu0 0.0
    %1956 = vmatpush1.msra.mxu0 %v1921
    %1957 = vmatprep.subr.mxu0 0.0
    %1958 = vmatpush2.msra.mxu0 0.0
    %1959 = vmatprep.subr.mxu0 0.0
    %1960 = vmatpush2.msra.mxu0 0.0
    %1961 = vmatprep.subr.mxu0 0.0
    %1962 = vmatpush2.msra.mxu0 0.0
    %1963 = vmatprep.subr.mxu0 0.0
    %1964 = vmatpush2.msra.mxu0 0.0
    %1965 = vmatprep.subr.mxu0 0.0
    %1966 = vmatpush2.msra.mxu0 0.0
    %1967 = vmatprep.subr.mxu0 0.0
    %1968 = vmatpush2.msra.mxu0 0.0
    %1969 = vmatprep.subr.mxu0 0.0
    %1970 = vmatpush2.msra.mxu0 0.0
    %1971 = vmatprep.subr.mxu0 0.0
    %1972 = vmatpush2.msra.mxu0 0.0
    %1973 = vmatprep.subr.mxu0 0.0
    %1974 = vmatpush2.msra.mxu0 0.0
    %1975 = vmatprep.subr.mxu0 0.0
    %1976 = vmatpush2.msra.mxu0 0.0
    %1977 = vmatprep.subr.mxu0 0.0
    %1978 = vmatpush2.msra.mxu0 0.0
    %1979 = vmatprep.subr.mxu0 0.0
    %1980 = vmatpush2.msra.mxu0 0.0
    %1981 = vmatprep.subr.mxu0 0.0
    %1982 = vmatpush2.msra.mxu0 0.0
    %1983 = vmatprep.subr.mxu0 0.0
    %1984 = vmatpush2.msra.mxu0 0.0
    %1985 = vmatprep.subr.mxu0 0.0
    %1986 = vmatpush2.msra.mxu0 0.0
    %1987 = vmatprep.subr.mxu0 0.0
    %1988 = vmatpush2.msra.mxu0 0.0
    %1989 = vmatprep.mubr.f32.mxu0 0.0
    %1990 = vmatmul.mubr.f32.gmra.mxu0 %v1923
    %v1991 = vpop.f32.mrf.mxu0
    %v1992 = vadd.f32 0.0, %v1991
    %v1993 = vpop.f32.mrf.mxu0
    %1994 = vdwg.mxu0
    %v1995 = vadd.f32 %v1838, %v1992
    %1997 = vrot.lane.b32.xlu0 %v899, 56
    %v1998 = vpop.permute.xlu0 %1997
    %2000 = vst.msk [vmem:[%s1536] sm:$0xff] %vm1370, %v1998
    %2001 = vrot.lane.b32.xlu0 %v162, 40
    %v2002 = vpop.permute.xlu0 %2001
    %v2004 = vsel %vm168, %v899, 0
    %2006 = vmatprep.subr.mxu0 0.0
    %2007 = vmatpush1.msra.mxu0 0.0
    %2008 = vmatprep.subr.mxu0 0.0
    %2009 = vmatpush1.msra.mxu0 0.0
    %2010 = vmatprep.subr.mxu0 0.0
    %2011 = vmatpush1.msra.mxu0 0.0
    %2012 = vmatprep.subr.mxu0 0.0
    %2013 = vmatpush1.msra.mxu0 0.0
    %2014 = vmatprep.subr.mxu0 0.0
    %2015 = vmatpush1.msra.mxu0 0.0
    %2016 = vmatprep.subr.mxu0 0.0
    %2017 = vmatpush1.msra.mxu0 0.0
    %2018 = vmatprep.subr.mxu0 0.0
    %2019 = vmatpush1.msra.mxu0 0.0
    %2020 = vmatprep.subr.mxu0 0.0
    %2021 = vmatpush1.msra.mxu0 0.0
    %2022 = vmatprep.subr.mxu0 0.0
    %2023 = vmatpush1.msra.mxu0 0.0
    %2024 = vmatprep.subr.mxu0 0.0
    %2025 = vmatpush1.msra.mxu0 0.0
    %2026 = vmatprep.subr.mxu0 0.0
    %2027 = vmatpush1.msra.mxu0 0.0
    %2028 = vmatprep.subr.mxu0 0.0
    %2029 = vmatpush1.msra.mxu0 0.0
    %2030 = vmatprep.subr.mxu0 0.0
    %2031 = vmatpush1.msra.mxu0 0.0
    %2032 = vmatprep.subr.mxu0 0.0
    %2033 = vmatpush1.msra.mxu0 0.0
    %2034 = vmatprep.subr.mxu0 0.0
    %2035 = vmatpush1.msra.mxu0 0.0
    %2036 = vmatprep.subr.mxu0 0.0
    %2037 = vmatpush1.msra.mxu0 %v2002
    %2038 = vmatprep.subr.mxu0 0.0
    %2039 = vmatpush2.msra.mxu0 0.0
    %2040 = vmatprep.subr.mxu0 0.0
    %2041 = vmatpush2.msra.mxu0 0.0
    %2042 = vmatprep.subr.mxu0 0.0
    %2043 = vmatpush2.msra.mxu0 0.0
    %2044 = vmatprep.subr.mxu0 0.0
    %2045 = vmatpush2.msra.mxu0 0.0
    %2046 = vmatprep.subr.mxu0 0.0
    %2047 = vmatpush2.msra.mxu0 0.0
    %2048 = vmatprep.subr.mxu0 0.0
    %2049 = vmatpush2.msra.mxu0 0.0
    %2050 = vmatprep.subr.mxu0 0.0
    %2051 = vmatpush2.msra.mxu0 0.0
    %2052 = vmatprep.subr.mxu0 0.0
    %2053 = vmatpush2.msra.mxu0 0.0
    %2054 = vmatprep.subr.mxu0 0.0
    %2055 = vmatpush2.msra.mxu0 0.0
    %2056 = vmatprep.subr.mxu0 0.0
    %2057 = vmatpush2.msra.mxu0 0.0
    %2058 = vmatprep.subr.mxu0 0.0
    %2059 = vmatpush2.msra.mxu0 0.0
    %2060 = vmatprep.subr.mxu0 0.0
    %2061 = vmatpush2.msra.mxu0 0.0
    %2062 = vmatprep.subr.mxu0 0.0
    %2063 = vmatpush2.msra.mxu0 0.0
    %2064 = vmatprep.subr.mxu0 0.0
    %2065 = vmatpush2.msra.mxu0 0.0
    %2066 = vmatprep.subr.mxu0 0.0
    %2067 = vmatpush2.msra.mxu0 0.0
    %2068 = vmatprep.subr.mxu0 0.0
    %2069 = vmatpush2.msra.mxu0 0.0
    %2070 = vmatprep.mubr.f32.mxu0 0.0
    %2071 = vmatmul.mubr.f32.gmra.mxu0 %v2004
    %v2072 = vpop.f32.mrf.mxu0
    %v2073 = vadd.f32 0.0, %v2072
    %v2074 = vpop.f32.mrf.mxu0
    %2075 = vdwg.mxu0
    %v2076 = vld [vmem:[#allocation7 + $0x18] sm:$0xff]
    %v2078 = vsel %vm168, %v2073, 0
    %2080 = vmatprep.subr.mxu0 0.0
    %2081 = vmatpush1.msra.mxu0 0.0
    %2082 = vmatprep.subr.mxu0 0.0
    %2083 = vmatpush1.msra.mxu0 0.0
    %2084 = vmatprep.subr.mxu0 0.0
    %2085 = vmatpush1.msra.mxu0 0.0
    %2086 = vmatprep.subr.mxu0 0.0
    %2087 = vmatpush1.msra.mxu0 0.0
    %2088 = vmatprep.subr.mxu0 0.0
    %2089 = vmatpush1.msra.mxu0 0.0
    %2090 = vmatprep.subr.mxu0 0.0
    %2091 = vmatpush1.msra.mxu0 0.0
    %2092 = vmatprep.subr.mxu0 0.0
    %2093 = vmatpush1.msra.mxu0 0.0
    %2094 = vmatprep.subr.mxu0 0.0
    %2095 = vmatpush1.msra.mxu0 0.0
    %2096 = vmatprep.subr.mxu0 0.0
    %2097 = vmatpush1.msra.mxu0 0.0
    %2098 = vmatprep.subr.mxu0 0.0
    %2099 = vmatpush1.msra.mxu0 0.0
    %2100 = vmatprep.subr.mxu0 0.0
    %2101 = vmatpush1.msra.mxu0 0.0
    %2102 = vmatprep.subr.mxu0 0.0
    %2103 = vmatpush1.msra.mxu0 0.0
    %2104 = vmatprep.subr.mxu0 0.0
    %2105 = vmatpush1.msra.mxu0 0.0
    %2106 = vmatprep.subr.mxu0 0.0
    %2107 = vmatpush1.msra.mxu0 0.0
    %2108 = vmatprep.subr.mxu0 0.0
    %2109 = vmatpush1.msra.mxu0 0.0
    %2110 = vmatprep.subr.mxu0 0.0
    %2111 = vmatpush1.msra.mxu0 %v2076
    %2112 = vmatprep.subr.mxu0 0.0
    %2113 = vmatpush2.msra.mxu0 0.0
    %2114 = vmatprep.subr.mxu0 0.0
    %2115 = vmatpush2.msra.mxu0 0.0
    %2116 = vmatprep.subr.mxu0 0.0
    %2117 = vmatpush2.msra.mxu0 0.0
    %2118 = vmatprep.subr.mxu0 0.0
    %2119 = vmatpush2.msra.mxu0 0.0
    %2120 = vmatprep.subr.mxu0 0.0
    %2121 = vmatpush2.msra.mxu0 0.0
    %2122 = vmatprep.subr.mxu0 0.0
    %2123 = vmatpush2.msra.mxu0 0.0
    %2124 = vmatprep.subr.mxu0 0.0
    %2125 = vmatpush2.msra.mxu0 0.0
    %2126 = vmatprep.subr.mxu0 0.0
    %2127 = vmatpush2.msra.mxu0 0.0
    %2128 = vmatprep.subr.mxu0 0.0
    %2129 = vmatpush2.msra.mxu0 0.0
    %2130 = vmatprep.subr.mxu0 0.0
    %2131 = vmatpush2.msra.mxu0 0.0
    %2132 = vmatprep.subr.mxu0 0.0
    %2133 = vmatpush2.msra.mxu0 0.0
    %2134 = vmatprep.subr.mxu0 0.0
    %2135 = vmatpush2.msra.mxu0 0.0
    %2136 = vmatprep.subr.mxu0 0.0
    %2137 = vmatpush2.msra.mxu0 0.0
    %2138 = vmatprep.subr.mxu0 0.0
    %2139 = vmatpush2.msra.mxu0 0.0
    %2140 = vmatprep.subr.mxu0 0.0
    %2141 = vmatpush2.msra.mxu0 0.0
    %2142 = vmatprep.subr.mxu0 0.0
    %2143 = vmatpush2.msra.mxu0 0.0
    %2144 = vmatprep.mubr.f32.mxu0 0.0
    %2145 = vmatmul.mubr.f32.gmra.mxu0 %v2078
    %v2146 = vpop.f32.mrf.mxu0
    %v2147 = vadd.f32 0.0, %v2146
    %v2148 = vpop.f32.mrf.mxu0
    %2149 = vdwg.mxu0
    %v2150 = vadd.f32 %v1995, %v2147
    %v2151 = vld [vmem:[%s4] sm:$0x1]
    %v2153 = vlaneseq
    %v2154 = vshrl.u32 %v2153, 7
    %v2155 = vsub.s32 0, %v2154
    %v2156 = vrot.slane %v2151, %v2155
    %v2158 = vadd.f32 %v2150, %v2156
    %2159 = vst.msk [vmem:[%s1536] sm:$0xff] %vm1530, %v2158
    // Predicated region
    $region34: #{tpu_custom_call.1} parent=1 // pred_check
      _
    $region35: #{tpu_custom_call.1} parent=1 // pred_check_branch
      %2161 = sbr.rel (0) target = $region37
    $region36: #{tpu_custom_call.1} parent=1 // pred_region
      %s2163 = ssub.s32 256, 256
      %2164 = vsyncadd [#allocation4], %s2163
      %s2165 = sshll.u32 [#allocation8], 4
      %s2166 = int_to_ptr.vmem [resolvable:$true] %s2165
      %2171 = dma.vmem_to_hbm [thread:$0]  %s2166, 256, %s5, [#allocation4], 128, 128, 8
    $region37: #{tpu_custom_call.1} parent=1 // pred_fallthru
      _
    // Predicated region
    $region38: #{tpu_custom_call.1} parent=1 // pred_check
      _
    $region39: #{tpu_custom_call.1} parent=1 // pred_check_branch
      %2173 = sbr.rel (0) target = $region41
    $region40: #{tpu_custom_call.1} parent=1 // pred_region
      %2174 = dma.done [#allocation4], 256
    $region41: #{tpu_custom_call.1} parent=1 // pred_fallthru
      _
    %2175 = vsyncpa [#allocation3], 1
    %2176 = vsyncpa [#allocation6], 1
    %2177 = vsyncpa [#allocation4], 1

</llo_original>
